<compile_context>
chip_gen: v5e
topology: v5e:2x2
jax: 0.10.0
libtpu: 0.0.40
codegen_flags: <defaults>
</compile_context>

<pallas_src>
import jax
import jax.numpy as jnp
from jax import lax
from jax.experimental import pallas as pl
from jax.experimental.pallas import tpu as pltpu


def mlp_kernel(w1_ref, b1_ref, w2_ref, b2_ref, x_ref, o_ref):
    """One (block_rows, 128) f32 tile, batch in the lane dim.

    w1_ref, b1_ref, w2_ref: (H,) f32 in SMEM.   b2_ref: (1,) f32 in SMEM.
    out[r, l] = b2 + sum_h w2[h] * sigmoid(x[r, l] * w1[h] + b1[h])
    """
    x = x_ref[...]                       # load tile once (hoisted out of the H loop)
    hidden = w1_ref.shape[0]

    acc0 = jnp.zeros_like(x) + b2_ref[0]

    def body(h, acc):
        pre = x * w1_ref[h] + b1_ref[h]                    # VPU FMA (scalar splat from SMEM)
        return acc + w2_ref[h] * jax.nn.sigmoid(pre)       # EUP sigmoid + VPU FMA

    acc = lax.fori_loop(0, hidden, body, acc0, unroll=True)
    o_ref[...] = acc.astype(o_ref.dtype)


def mlp_forward(x, w1, b1, w2, b2, *, block_rows=512, lanes=128):
    """x: (N, 1) f32; w1, b1, w2: (H,); b2: (1,).  Returns (N, 1) f32."""
    n = x.shape[0]
    hidden = w1.shape[0]

    tile_elems = block_rows * lanes
    num_blocks = pl.cdiv(n, tile_elems)
    rows_total = num_blocks * block_rows
    n_pad = rows_total * lanes

    # Lane-dense layout: flatten the batch, pad to a whole number of tiles,
    # and put batch in the lane (last) dimension.
    x2d = jnp.pad(jnp.ravel(x).astype(jnp.float32), (0, n_pad - n)).reshape(
        rows_total, lanes
    )

    smem = pl.BlockSpec(memory_space=pltpu.MemorySpace.SMEM)

    out2d = pl.pallas_call(
        mlp_kernel,
        out_shape=jax.ShapeDtypeStruct((rows_total, lanes), jnp.float32),
        grid=(num_blocks,),
        in_specs=[
            smem,  # w1
            smem,  # b1
            smem,  # w2
            smem,  # b2
            pl.BlockSpec((block_rows, lanes), lambda i: (i, 0)),  # x tile
        ],
        out_specs=pl.BlockSpec((block_rows, lanes), lambda i: (i, 0)),
        compiler_params=pltpu.CompilerParams(
            dimension_semantics=("parallel",),  # megacore sharding over the batch axis
        ),
        cost_estimate=pl.CostEstimate(
            flops=4 * hidden * n_pad,          # 2 FMAs per (elem, h)
            transcendentals=hidden * n_pad,    # one sigmoid per (elem, h)
            bytes_accessed=8 * n_pad + 16 * hidden,
        ),
    )(w1, b1, w2, b2, x2d)

    return out2d.reshape(-1)[:n].reshape(n, 1)


def init_params(key, hidden_dim):
    """Deterministic init mimicking nn.Linear's U(-1/sqrt(fan_in), 1/sqrt(fan_in)).

    Stored as flat vectors: w1, b1, w2 -> (H,), b2 -> (1,).
    """
    k1, k2, k3, k4 = jax.random.split(key, 4)
    bound1 = 1.0  # 1/sqrt(1)
    w1 = jax.random.uniform(k1, (hidden_dim,), jnp.float32, -bound1, bound1)
    b1 = jax.random.uniform(k2, (hidden_dim,), jnp.float32, -bound1, bound1)
    bound2 = 1.0 / (hidden_dim ** 0.5)
    w2 = jax.random.uniform(k3, (hidden_dim,), jnp.float32, -bound2, bound2)
    b2 = jax.random.uniform(k4, (1,), jnp.float32, -bound2, bound2)
    return w1, b1, w2, b2


if __name__ == "__main__":
    hidden_dim = 32
    batch = 2500          # not a multiple of the tile -> exercises padding + 3 grid steps
    block_rows = 8        # small tile for the small demo; default is 512 for real N

    key = jax.random.PRNGKey(0)
    kx, kp = jax.random.split(key)

    x = jax.random.normal(kx, (batch, 1), dtype=jnp.float32)
    w1, b1, w2, b2 = init_params(kp, hidden_dim)

    out = mlp_forward(x, w1, b1, w2, b2, block_rows=block_rows)
    out = jax.block_until_ready(out)

    # Reference in plain JAX (same math as the PyTorch forward).
    ref = jax.nn.sigmoid(x @ w1[None, :] + b1[None, :]) @ w2[:, None] + b2[None, :]
    assert out.shape == (batch, 1)
    assert jnp.allclose(out, ref, atol=1e-5, rtol=1e-5)

    print("KERNEL_OK")
</pallas_src>

<mosaic_0001>
module attributes {stable_mosaic.version = 11 : i64} {
  func.func @mlp_kernel(%arg0: i32, %arg1: memref<32xf32, #tpu.memory_space<smem>>, %arg2: memref<32xf32, #tpu.memory_space<smem>>, %arg3: memref<32xf32, #tpu.memory_space<smem>>, %arg4: memref<1xf32, #tpu.memory_space<smem>>, %arg5: memref<8x128xf32, #tpu.memory_space<vmem>>, %arg6: memref<8x128xf32, #tpu.memory_space<vmem>>) attributes {dimension_semantics = [#tpu.dimension_semantics<parallel>], iteration_bounds = array<i64: 3>, scalar_prefetch = 0 : i64, scratch_operands = 0 : i64, tpu.core_type = #tpu.core_type<tc>, window_params = [{transform_indices = @transform_0, window_bounds = array<i64: 32>}, {transform_indices = @transform_1, window_bounds = array<i64: 32>}, {transform_indices = @transform_2, window_bounds = array<i64: 32>}, {transform_indices = @transform_3, window_bounds = array<i64: 1>}, {transform_indices = @transform_4, window_bounds = array<i64: 8, 128>}, {transform_indices = @transform_5, window_bounds = array<i64: 8, 128>}]} {
    %c0 = arith.constant 0 : index
    %c0_0 = arith.constant 0 : index
    %0 = vector.load %arg5[%c0, %c0_0] : memref<8x128xf32, #tpu.memory_space<vmem>>, vector<8x128xf32>
    %cst = arith.constant 0.000000e+00 : f32
    %1 = vector.broadcast %cst : f32 to vector<8x128xf32>
    %c0_1 = arith.constant 0 : index
    %2 = memref.load %arg4[%c0_1] : memref<1xf32, #tpu.memory_space<smem>>
    %3 = vector.broadcast %2 : f32 to vector<8x128xf32>
    %4 = arith.addf %1, %3 : vector<8x128xf32>
    %c0_i32 = arith.constant 0 : i32
    %5 = arith.index_cast %c0_i32 : i32 to index
    %6 = memref.load %arg1[%5] : memref<32xf32, #tpu.memory_space<smem>>
    %7 = vector.broadcast %6 : f32 to vector<8x128xf32>
    %8 = arith.mulf %0, %7 : vector<8x128xf32>
    %9 = arith.index_cast %c0_i32 : i32 to index
    %10 = memref.load %arg2[%9] : memref<32xf32, #tpu.memory_space<smem>>
    %11 = vector.broadcast %10 : f32 to vector<8x128xf32>
    %12 = arith.addf %8, %11 : vector<8x128xf32>
    %13 = arith.index_cast %c0_i32 : i32 to index
    %14 = memref.load %arg3[%13] : memref<32xf32, #tpu.memory_space<smem>>
    %15 = arith.negf %12 : vector<8x128xf32>
    %16 = math.exp %15 : vector<8x128xf32>
    %cst_2 = arith.constant 1.000000e+00 : f32
    %17 = vector.broadcast %cst_2 : f32 to vector<8x128xf32>
    %18 = arith.addf %17, %16 : vector<8x128xf32>
    %19 = arith.divf %17, %18 : vector<8x128xf32>
    %20 = vector.broadcast %14 : f32 to vector<8x128xf32>
    %21 = arith.mulf %20, %19 : vector<8x128xf32>
    %22 = arith.addf %4, %21 : vector<8x128xf32>
    %c1_i32 = arith.constant 1 : i32
    %23 = arith.index_cast %c1_i32 : i32 to index
    %24 = memref.load %arg1[%23] : memref<32xf32, #tpu.memory_space<smem>>
    %25 = vector.broadcast %24 : f32 to vector<8x128xf32>
    %26 = arith.mulf %0, %25 : vector<8x128xf32>
    %27 = arith.index_cast %c1_i32 : i32 to index
    %28 = memref.load %arg2[%27] : memref<32xf32, #tpu.memory_space<smem>>
    %29 = vector.broadcast %28 : f32 to vector<8x128xf32>
    %30 = arith.addf %26, %29 : vector<8x128xf32>
    %31 = arith.index_cast %c1_i32 : i32 to index
    %32 = memref.load %arg3[%31] : memref<32xf32, #tpu.memory_space<smem>>
    %33 = arith.negf %30 : vector<8x128xf32>
    %34 = math.exp %33 : vector<8x128xf32>
    %cst_3 = arith.constant 1.000000e+00 : f32
    %35 = vector.broadcast %cst_3 : f32 to vector<8x128xf32>
    %36 = arith.addf %35, %34 : vector<8x128xf32>
    %37 = arith.divf %35, %36 : vector<8x128xf32>
    %38 = vector.broadcast %32 : f32 to vector<8x128xf32>
    %39 = arith.mulf %38, %37 : vector<8x128xf32>
    %40 = arith.addf %22, %39 : vector<8x128xf32>
    %c2_i32 = arith.constant 2 : i32
    %41 = arith.index_cast %c2_i32 : i32 to index
    %42 = memref.load %arg1[%41] : memref<32xf32, #tpu.memory_space<smem>>
    %43 = vector.broadcast %42 : f32 to vector<8x128xf32>
    %44 = arith.mulf %0, %43 : vector<8x128xf32>
    %45 = arith.index_cast %c2_i32 : i32 to index
    %46 = memref.load %arg2[%45] : memref<32xf32, #tpu.memory_space<smem>>
    %47 = vector.broadcast %46 : f32 to vector<8x128xf32>
    %48 = arith.addf %44, %47 : vector<8x128xf32>
    %49 = arith.index_cast %c2_i32 : i32 to index
    %50 = memref.load %arg3[%49] : memref<32xf32, #tpu.memory_space<smem>>
    %51 = arith.negf %48 : vector<8x128xf32>
    %52 = math.exp %51 : vector<8x128xf32>
    %cst_4 = arith.constant 1.000000e+00 : f32
    %53 = vector.broadcast %cst_4 : f32 to vector<8x128xf32>
    %54 = arith.addf %53, %52 : vector<8x128xf32>
    %55 = arith.divf %53, %54 : vector<8x128xf32>
    %56 = vector.broadcast %50 : f32 to vector<8x128xf32>
    %57 = arith.mulf %56, %55 : vector<8x128xf32>
    %58 = arith.addf %40, %57 : vector<8x128xf32>
    %c3_i32 = arith.constant 3 : i32
    %59 = arith.index_cast %c3_i32 : i32 to index
    %60 = memref.load %arg1[%59] : memref<32xf32, #tpu.memory_space<smem>>
    %61 = vector.broadcast %60 : f32 to vector<8x128xf32>
    %62 = arith.mulf %0, %61 : vector<8x128xf32>
    %63 = arith.index_cast %c3_i32 : i32 to index
    %64 = memref.load %arg2[%63] : memref<32xf32, #tpu.memory_space<smem>>
    %65 = vector.broadcast %64 : f32 to vector<8x128xf32>
    %66 = arith.addf %62, %65 : vector<8x128xf32>
    %67 = arith.index_cast %c3_i32 : i32 to index
    %68 = memref.load %arg3[%67] : memref<32xf32, #tpu.memory_space<smem>>
    %69 = arith.negf %66 : vector<8x128xf32>
    %70 = math.exp %69 : vector<8x128xf32>
    %cst_5 = arith.constant 1.000000e+00 : f32
    %71 = vector.broadcast %cst_5 : f32 to vector<8x128xf32>
    %72 = arith.addf %71, %70 : vector<8x128xf32>
    %73 = arith.divf %71, %72 : vector<8x128xf32>
    %74 = vector.broadcast %68 : f32 to vector<8x128xf32>
    %75 = arith.mulf %74, %73 : vector<8x128xf32>
    %76 = arith.addf %58, %75 : vector<8x128xf32>
    %c4_i32 = arith.constant 4 : i32
    %77 = arith.index_cast %c4_i32 : i32 to index
    %78 = memref.load %arg1[%77] : memref<32xf32, #tpu.memory_space<smem>>
    %79 = vector.broadcast %78 : f32 to vector<8x128xf32>
    %80 = arith.mulf %0, %79 : vector<8x128xf32>
    %81 = arith.index_cast %c4_i32 : i32 to index
    %82 = memref.load %arg2[%81] : memref<32xf32, #tpu.memory_space<smem>>
    %83 = vector.broadcast %82 : f32 to vector<8x128xf32>
    %84 = arith.addf %80, %83 : vector<8x128xf32>
    %85 = arith.index_cast %c4_i32 : i32 to index
    %86 = memref.load %arg3[%85] : memref<32xf32, #tpu.memory_space<smem>>
    %87 = arith.negf %84 : vector<8x128xf32>
    %88 = math.exp %87 : vector<8x128xf32>
    %cst_6 = arith.constant 1.000000e+00 : f32
    %89 = vector.broadcast %cst_6 : f32 to vector<8x128xf32>
    %90 = arith.addf %89, %88 : vector<8x128xf32>
    %91 = arith.divf %89, %90 : vector<8x128xf32>
    %92 = vector.broadcast %86 : f32 to vector<8x128xf32>
    %93 = arith.mulf %92, %91 : vector<8x128xf32>
    %94 = arith.addf %76, %93 : vector<8x128xf32>
    %c5_i32 = arith.constant 5 : i32
    %95 = arith.index_cast %c5_i32 : i32 to index
    %96 = memref.load %arg1[%95] : memref<32xf32, #tpu.memory_space<smem>>
    %97 = vector.broadcast %96 : f32 to vector<8x128xf32>
    %98 = arith.mulf %0, %97 : vector<8x128xf32>
    %99 = arith.index_cast %c5_i32 : i32 to index
    %100 = memref.load %arg2[%99] : memref<32xf32, #tpu.memory_space<smem>>
    %101 = vector.broadcast %100 : f32 to vector<8x128xf32>
    %102 = arith.addf %98, %101 : vector<8x128xf32>
    %103 = arith.index_cast %c5_i32 : i32 to index
    %104 = memref.load %arg3[%103] : memref<32xf32, #tpu.memory_space<smem>>
    %105 = arith.negf %102 : vector<8x128xf32>
    %106 = math.exp %105 : vector<8x128xf32>
    %cst_7 = arith.constant 1.000000e+00 : f32
    %107 = vector.broadcast %cst_7 : f32 to vector<8x128xf32>
    %108 = arith.addf %107, %106 : vector<8x128xf32>
    %109 = arith.divf %107, %108 : vector<8x128xf32>
    %110 = vector.broadcast %104 : f32 to vector<8x128xf32>
    %111 = arith.mulf %110, %109 : vector<8x128xf32>
    %112 = arith.addf %94, %111 : vector<8x128xf32>
    %c6_i32 = arith.constant 6 : i32
    %113 = arith.index_cast %c6_i32 : i32 to index
    %114 = memref.load %arg1[%113] : memref<32xf32, #tpu.memory_space<smem>>
    %115 = vector.broadcast %114 : f32 to vector<8x128xf32>
    %116 = arith.mulf %0, %115 : vector<8x128xf32>
    %117 = arith.index_cast %c6_i32 : i32 to index
    %118 = memref.load %arg2[%117] : memref<32xf32, #tpu.memory_space<smem>>
    %119 = vector.broadcast %118 : f32 to vector<8x128xf32>
    %120 = arith.addf %116, %119 : vector<8x128xf32>
    %121 = arith.index_cast %c6_i32 : i32 to index
    %122 = memref.load %arg3[%121] : memref<32xf32, #tpu.memory_space<smem>>
    %123 = arith.negf %120 : vector<8x128xf32>
    %124 = math.exp %123 : vector<8x128xf32>
    %cst_8 = arith.constant 1.000000e+00 : f32
    %125 = vector.broadcast %cst_8 : f32 to vector<8x128xf32>
    %126 = arith.addf %125, %124 : vector<8x128xf32>
    %127 = arith.divf %125, %126 : vector<8x128xf32>
    %128 = vector.broadcast %122 : f32 to vector<8x128xf32>
    %129 = arith.mulf %128, %127 : vector<8x128xf32>
    %130 = arith.addf %112, %129 : vector<8x128xf32>
    %c7_i32 = arith.constant 7 : i32
    %131 = arith.index_cast %c7_i32 : i32 to index
    %132 = memref.load %arg1[%131] : memref<32xf32, #tpu.memory_space<smem>>
    %133 = vector.broadcast %132 : f32 to vector<8x128xf32>
    %134 = arith.mulf %0, %133 : vector<8x128xf32>
    %135 = arith.index_cast %c7_i32 : i32 to index
    %136 = memref.load %arg2[%135] : memref<32xf32, #tpu.memory_space<smem>>
    %137 = vector.broadcast %136 : f32 to vector<8x128xf32>
    %138 = arith.addf %134, %137 : vector<8x128xf32>
    %139 = arith.index_cast %c7_i32 : i32 to index
    %140 = memref.load %arg3[%139] : memref<32xf32, #tpu.memory_space<smem>>
    %141 = arith.negf %138 : vector<8x128xf32>
    %142 = math.exp %141 : vector<8x128xf32>
    %cst_9 = arith.constant 1.000000e+00 : f32
    %143 = vector.broadcast %cst_9 : f32 to vector<8x128xf32>
    %144 = arith.addf %143, %142 : vector<8x128xf32>
    %145 = arith.divf %143, %144 : vector<8x128xf32>
    %146 = vector.broadcast %140 : f32 to vector<8x128xf32>
    %147 = arith.mulf %146, %145 : vector<8x128xf32>
    %148 = arith.addf %130, %147 : vector<8x128xf32>
    %c8_i32 = arith.constant 8 : i32
    %149 = arith.index_cast %c8_i32 : i32 to index
    %150 = memref.load %arg1[%149] : memref<32xf32, #tpu.memory_space<smem>>
    %151 = vector.broadcast %150 : f32 to vector<8x128xf32>
    %152 = arith.mulf %0, %151 : vector<8x128xf32>
    %153 = arith.index_cast %c8_i32 : i32 to index
    %154 = memref.load %arg2[%153] : memref<32xf32, #tpu.memory_space<smem>>
    %155 = vector.broadcast %154 : f32 to vector<8x128xf32>
    %156 = arith.addf %152, %155 : vector<8x128xf32>
    %157 = arith.index_cast %c8_i32 : i32 to index
    %158 = memref.load %arg3[%157] : memref<32xf32, #tpu.memory_space<smem>>
    %159 = arith.negf %156 : vector<8x128xf32>
    %160 = math.exp %159 : vector<8x128xf32>
    %cst_10 = arith.constant 1.000000e+00 : f32
    %161 = vector.broadcast %cst_10 : f32 to vector<8x128xf32>
    %162 = arith.addf %161, %160 : vector<8x128xf32>
    %163 = arith.divf %161, %162 : vector<8x128xf32>
    %164 = vector.broadcast %158 : f32 to vector<8x128xf32>
    %165 = arith.mulf %164, %163 : vector<8x128xf32>
    %166 = arith.addf %148, %165 : vector<8x128xf32>
    %c9_i32 = arith.constant 9 : i32
    %167 = arith.index_cast %c9_i32 : i32 to index
    %168 = memref.load %arg1[%167] : memref<32xf32, #tpu.memory_space<smem>>
    %169 = vector.broadcast %168 : f32 to vector<8x128xf32>
    %170 = arith.mulf %0, %169 : vector<8x128xf32>
    %171 = arith.index_cast %c9_i32 : i32 to index
    %172 = memref.load %arg2[%171] : memref<32xf32, #tpu.memory_space<smem>>
    %173 = vector.broadcast %172 : f32 to vector<8x128xf32>
    %174 = arith.addf %170, %173 : vector<8x128xf32>
    %175 = arith.index_cast %c9_i32 : i32 to index
    %176 = memref.load %arg3[%175] : memref<32xf32, #tpu.memory_space<smem>>
    %177 = arith.negf %174 : vector<8x128xf32>
    %178 = math.exp %177 : vector<8x128xf32>
    %cst_11 = arith.constant 1.000000e+00 : f32
    %179 = vector.broadcast %cst_11 : f32 to vector<8x128xf32>
    %180 = arith.addf %179, %178 : vector<8x128xf32>
    %181 = arith.divf %179, %180 : vector<8x128xf32>
    %182 = vector.broadcast %176 : f32 to vector<8x128xf32>
    %183 = arith.mulf %182, %181 : vector<8x128xf32>
    %184 = arith.addf %166, %183 : vector<8x128xf32>
    %c10_i32 = arith.constant 10 : i32
    %185 = arith.index_cast %c10_i32 : i32 to index
    %186 = memref.load %arg1[%185] : memref<32xf32, #tpu.memory_space<smem>>
    %187 = vector.broadcast %186 : f32 to vector<8x128xf32>
    %188 = arith.mulf %0, %187 : vector<8x128xf32>
    %189 = arith.index_cast %c10_i32 : i32 to index
    %190 = memref.load %arg2[%189] : memref<32xf32, #tpu.memory_space<smem>>
    %191 = vector.broadcast %190 : f32 to vector<8x128xf32>
    %192 = arith.addf %188, %191 : vector<8x128xf32>
    %193 = arith.index_cast %c10_i32 : i32 to index
    %194 = memref.load %arg3[%193] : memref<32xf32, #tpu.memory_space<smem>>
    %195 = arith.negf %192 : vector<8x128xf32>
    %196 = math.exp %195 : vector<8x128xf32>
    %cst_12 = arith.constant 1.000000e+00 : f32
    %197 = vector.broadcast %cst_12 : f32 to vector<8x128xf32>
    %198 = arith.addf %197, %196 : vector<8x128xf32>
    %199 = arith.divf %197, %198 : vector<8x128xf32>
    %200 = vector.broadcast %194 : f32 to vector<8x128xf32>
    %201 = arith.mulf %200, %199 : vector<8x128xf32>
    %202 = arith.addf %184, %201 : vector<8x128xf32>
    %c11_i32 = arith.constant 11 : i32
    %203 = arith.index_cast %c11_i32 : i32 to index
    %204 = memref.load %arg1[%203] : memref<32xf32, #tpu.memory_space<smem>>
    %205 = vector.broadcast %204 : f32 to vector<8x128xf32>
    %206 = arith.mulf %0, %205 : vector<8x128xf32>
    %207 = arith.index_cast %c11_i32 : i32 to index
    %208 = memref.load %arg2[%207] : memref<32xf32, #tpu.memory_space<smem>>
    %209 = vector.broadcast %208 : f32 to vector<8x128xf32>
    %210 = arith.addf %206, %209 : vector<8x128xf32>
    %211 = arith.index_cast %c11_i32 : i32 to index
    %212 = memref.load %arg3[%211] : memref<32xf32, #tpu.memory_space<smem>>
    %213 = arith.negf %210 : vector<8x128xf32>
    %214 = math.exp %213 : vector<8x128xf32>
    %cst_13 = arith.constant 1.000000e+00 : f32
    %215 = vector.broadcast %cst_13 : f32 to vector<8x128xf32>
    %216 = arith.addf %215, %214 : vector<8x128xf32>
    %217 = arith.divf %215, %216 : vector<8x128xf32>
    %218 = vector.broadcast %212 : f32 to vector<8x128xf32>
    %219 = arith.mulf %218, %217 : vector<8x128xf32>
    %220 = arith.addf %202, %219 : vector<8x128xf32>
    %c12_i32 = arith.constant 12 : i32
    %221 = arith.index_cast %c12_i32 : i32 to index
    %222 = memref.load %arg1[%221] : memref<32xf32, #tpu.memory_space<smem>>
    %223 = vector.broadcast %222 : f32 to vector<8x128xf32>
    %224 = arith.mulf %0, %223 : vector<8x128xf32>
    %225 = arith.index_cast %c12_i32 : i32 to index
    %226 = memref.load %arg2[%225] : memref<32xf32, #tpu.memory_space<smem>>
    %227 = vector.broadcast %226 : f32 to vector<8x128xf32>
    %228 = arith.addf %224, %227 : vector<8x128xf32>
    %229 = arith.index_cast %c12_i32 : i32 to index
    %230 = memref.load %arg3[%229] : memref<32xf32, #tpu.memory_space<smem>>
    %231 = arith.negf %228 : vector<8x128xf32>
    %232 = math.exp %231 : vector<8x128xf32>
    %cst_14 = arith.constant 1.000000e+00 : f32
    %233 = vector.broadcast %cst_14 : f32 to vector<8x128xf32>
    %234 = arith.addf %233, %232 : vector<8x128xf32>
    %235 = arith.divf %233, %234 : vector<8x128xf32>
    %236 = vector.broadcast %230 : f32 to vector<8x128xf32>
    %237 = arith.mulf %236, %235 : vector<8x128xf32>
    %238 = arith.addf %220, %237 : vector<8x128xf32>
    %c13_i32 = arith.constant 13 : i32
    %239 = arith.index_cast %c13_i32 : i32 to index
    %240 = memref.load %arg1[%239] : memref<32xf32, #tpu.memory_space<smem>>
    %241 = vector.broadcast %240 : f32 to vector<8x128xf32>
    %242 = arith.mulf %0, %241 : vector<8x128xf32>
    %243 = arith.index_cast %c13_i32 : i32 to index
    %244 = memref.load %arg2[%243] : memref<32xf32, #tpu.memory_space<smem>>
    %245 = vector.broadcast %244 : f32 to vector<8x128xf32>
    %246 = arith.addf %242, %245 : vector<8x128xf32>
    %247 = arith.index_cast %c13_i32 : i32 to index
    %248 = memref.load %arg3[%247] : memref<32xf32, #tpu.memory_space<smem>>
    %249 = arith.negf %246 : vector<8x128xf32>
    %250 = math.exp %249 : vector<8x128xf32>
    %cst_15 = arith.constant 1.000000e+00 : f32
    %251 = vector.broadcast %cst_15 : f32 to vector<8x128xf32>
    %252 = arith.addf %251, %250 : vector<8x128xf32>
    %253 = arith.divf %251, %252 : vector<8x128xf32>
    %254 = vector.broadcast %248 : f32 to vector<8x128xf32>
    %255 = arith.mulf %254, %253 : vector<8x128xf32>
    %256 = arith.addf %238, %255 : vector<8x128xf32>
    %c14_i32 = arith.constant 14 : i32
    %257 = arith.index_cast %c14_i32 : i32 to index
    %258 = memref.load %arg1[%257] : memref<32xf32, #tpu.memory_space<smem>>
    %259 = vector.broadcast %258 : f32 to vector<8x128xf32>
    %260 = arith.mulf %0, %259 : vector<8x128xf32>
    %261 = arith.index_cast %c14_i32 : i32 to index
    %262 = memref.load %arg2[%261] : memref<32xf32, #tpu.memory_space<smem>>
    %263 = vector.broadcast %262 : f32 to vector<8x128xf32>
    %264 = arith.addf %260, %263 : vector<8x128xf32>
    %265 = arith.index_cast %c14_i32 : i32 to index
    %266 = memref.load %arg3[%265] : memref<32xf32, #tpu.memory_space<smem>>
    %267 = arith.negf %264 : vector<8x128xf32>
    %268 = math.exp %267 : vector<8x128xf32>
    %cst_16 = arith.constant 1.000000e+00 : f32
    %269 = vector.broadcast %cst_16 : f32 to vector<8x128xf32>
    %270 = arith.addf %269, %268 : vector<8x128xf32>
    %271 = arith.divf %269, %270 : vector<8x128xf32>
    %272 = vector.broadcast %266 : f32 to vector<8x128xf32>
    %273 = arith.mulf %272, %271 : vector<8x128xf32>
    %274 = arith.addf %256, %273 : vector<8x128xf32>
    %c15_i32 = arith.constant 15 : i32
    %275 = arith.index_cast %c15_i32 : i32 to index
    %276 = memref.load %arg1[%275] : memref<32xf32, #tpu.memory_space<smem>>
    %277 = vector.broadcast %276 : f32 to vector<8x128xf32>
    %278 = arith.mulf %0, %277 : vector<8x128xf32>
    %279 = arith.index_cast %c15_i32 : i32 to index
    %280 = memref.load %arg2[%279] : memref<32xf32, #tpu.memory_space<smem>>
    %281 = vector.broadcast %280 : f32 to vector<8x128xf32>
    %282 = arith.addf %278, %281 : vector<8x128xf32>
    %283 = arith.index_cast %c15_i32 : i32 to index
    %284 = memref.load %arg3[%283] : memref<32xf32, #tpu.memory_space<smem>>
    %285 = arith.negf %282 : vector<8x128xf32>
    %286 = math.exp %285 : vector<8x128xf32>
    %cst_17 = arith.constant 1.000000e+00 : f32
    %287 = vector.broadcast %cst_17 : f32 to vector<8x128xf32>
    %288 = arith.addf %287, %286 : vector<8x128xf32>
    %289 = arith.divf %287, %288 : vector<8x128xf32>
    %290 = vector.broadcast %284 : f32 to vector<8x128xf32>
    %291 = arith.mulf %290, %289 : vector<8x128xf32>
    %292 = arith.addf %274, %291 : vector<8x128xf32>
    %c16_i32 = arith.constant 16 : i32
    %293 = arith.index_cast %c16_i32 : i32 to index
    %294 = memref.load %arg1[%293] : memref<32xf32, #tpu.memory_space<smem>>
    %295 = vector.broadcast %294 : f32 to vector<8x128xf32>
    %296 = arith.mulf %0, %295 : vector<8x128xf32>
    %297 = arith.index_cast %c16_i32 : i32 to index
    %298 = memref.load %arg2[%297] : memref<32xf32, #tpu.memory_space<smem>>
    %299 = vector.broadcast %298 : f32 to vector<8x128xf32>
    %300 = arith.addf %296, %299 : vector<8x128xf32>
    %301 = arith.index_cast %c16_i32 : i32 to index
    %302 = memref.load %arg3[%301] : memref<32xf32, #tpu.memory_space<smem>>
    %303 = arith.negf %300 : vector<8x128xf32>
    %304 = math.exp %303 : vector<8x128xf32>
    %cst_18 = arith.constant 1.000000e+00 : f32
    %305 = vector.broadcast %cst_18 : f32 to vector<8x128xf32>
    %306 = arith.addf %305, %304 : vector<8x128xf32>
    %307 = arith.divf %305, %306 : vector<8x128xf32>
    %308 = vector.broadcast %302 : f32 to vector<8x128xf32>
    %309 = arith.mulf %308, %307 : vector<8x128xf32>
    %310 = arith.addf %292, %309 : vector<8x128xf32>
    %c17_i32 = arith.constant 17 : i32
    %311 = arith.index_cast %c17_i32 : i32 to index
    %312 = memref.load %arg1[%311] : memref<32xf32, #tpu.memory_space<smem>>
    %313 = vector.broadcast %312 : f32 to vector<8x128xf32>
    %314 = arith.mulf %0, %313 : vector<8x128xf32>
    %315 = arith.index_cast %c17_i32 : i32 to index
    %316 = memref.load %arg2[%315] : memref<32xf32, #tpu.memory_space<smem>>
    %317 = vector.broadcast %316 : f32 to vector<8x128xf32>
    %318 = arith.addf %314, %317 : vector<8x128xf32>
    %319 = arith.index_cast %c17_i32 : i32 to index
    %320 = memref.load %arg3[%319] : memref<32xf32, #tpu.memory_space<smem>>
    %321 = arith.negf %318 : vector<8x128xf32>
    %322 = math.exp %321 : vector<8x128xf32>
    %cst_19 = arith.constant 1.000000e+00 : f32
    %323 = vector.broadcast %cst_19 : f32 to vector<8x128xf32>
    %324 = arith.addf %323, %322 : vector<8x128xf32>
    %325 = arith.divf %323, %324 : vector<8x128xf32>
    %326 = vector.broadcast %320 : f32 to vector<8x128xf32>
    %327 = arith.mulf %326, %325 : vector<8x128xf32>
    %328 = arith.addf %310, %327 : vector<8x128xf32>
    %c18_i32 = arith.constant 18 : i32
    %329 = arith.index_cast %c18_i32 : i32 to index
    %330 = memref.load %arg1[%329] : memref<32xf32, #tpu.memory_space<smem>>
    %331 = vector.broadcast %330 : f32 to vector<8x128xf32>
    %332 = arith.mulf %0, %331 : vector<8x128xf32>
    %333 = arith.index_cast %c18_i32 : i32 to index
    %334 = memref.load %arg2[%333] : memref<32xf32, #tpu.memory_space<smem>>
    %335 = vector.broadcast %334 : f32 to vector<8x128xf32>
    %336 = arith.addf %332, %335 : vector<8x128xf32>
    %337 = arith.index_cast %c18_i32 : i32 to index
    %338 = memref.load %arg3[%337] : memref<32xf32, #tpu.memory_space<smem>>
    %339 = arith.negf %336 : vector<8x128xf32>
    %340 = math.exp %339 : vector<8x128xf32>
    %cst_20 = arith.constant 1.000000e+00 : f32
    %341 = vector.broadcast %cst_20 : f32 to vector<8x128xf32>
    %342 = arith.addf %341, %340 : vector<8x128xf32>
    %343 = arith.divf %341, %342 : vector<8x128xf32>
    %344 = vector.broadcast %338 : f32 to vector<8x128xf32>
    %345 = arith.mulf %344, %343 : vector<8x128xf32>
    %346 = arith.addf %328, %345 : vector<8x128xf32>
    %c19_i32 = arith.constant 19 : i32
    %347 = arith.index_cast %c19_i32 : i32 to index
    %348 = memref.load %arg1[%347] : memref<32xf32, #tpu.memory_space<smem>>
    %349 = vector.broadcast %348 : f32 to vector<8x128xf32>
    %350 = arith.mulf %0, %349 : vector<8x128xf32>
    %351 = arith.index_cast %c19_i32 : i32 to index
    %352 = memref.load %arg2[%351] : memref<32xf32, #tpu.memory_space<smem>>
    %353 = vector.broadcast %352 : f32 to vector<8x128xf32>
    %354 = arith.addf %350, %353 : vector<8x128xf32>
    %355 = arith.index_cast %c19_i32 : i32 to index
    %356 = memref.load %arg3[%355] : memref<32xf32, #tpu.memory_space<smem>>
    %357 = arith.negf %354 : vector<8x128xf32>
    %358 = math.exp %357 : vector<8x128xf32>
    %cst_21 = arith.constant 1.000000e+00 : f32
    %359 = vector.broadcast %cst_21 : f32 to vector<8x128xf32>
    %360 = arith.addf %359, %358 : vector<8x128xf32>
    %361 = arith.divf %359, %360 : vector<8x128xf32>
    %362 = vector.broadcast %356 : f32 to vector<8x128xf32>
    %363 = arith.mulf %362, %361 : vector<8x128xf32>
    %364 = arith.addf %346, %363 : vector<8x128xf32>
    %c20_i32 = arith.constant 20 : i32
    %365 = arith.index_cast %c20_i32 : i32 to index
    %366 = memref.load %arg1[%365] : memref<32xf32, #tpu.memory_space<smem>>
    %367 = vector.broadcast %366 : f32 to vector<8x128xf32>
    %368 = arith.mulf %0, %367 : vector<8x128xf32>
    %369 = arith.index_cast %c20_i32 : i32 to index
    %370 = memref.load %arg2[%369] : memref<32xf32, #tpu.memory_space<smem>>
    %371 = vector.broadcast %370 : f32 to vector<8x128xf32>
    %372 = arith.addf %368, %371 : vector<8x128xf32>
    %373 = arith.index_cast %c20_i32 : i32 to index
    %374 = memref.load %arg3[%373] : memref<32xf32, #tpu.memory_space<smem>>
    %375 = arith.negf %372 : vector<8x128xf32>
    %376 = math.exp %375 : vector<8x128xf32>
    %cst_22 = arith.constant 1.000000e+00 : f32
    %377 = vector.broadcast %cst_22 : f32 to vector<8x128xf32>
    %378 = arith.addf %377, %376 : vector<8x128xf32>
    %379 = arith.divf %377, %378 : vector<8x128xf32>
    %380 = vector.broadcast %374 : f32 to vector<8x128xf32>
    %381 = arith.mulf %380, %379 : vector<8x128xf32>
    %382 = arith.addf %364, %381 : vector<8x128xf32>
    %c21_i32 = arith.constant 21 : i32
    %383 = arith.index_cast %c21_i32 : i32 to index
    %384 = memref.load %arg1[%383] : memref<32xf32, #tpu.memory_space<smem>>
    %385 = vector.broadcast %384 : f32 to vector<8x128xf32>
    %386 = arith.mulf %0, %385 : vector<8x128xf32>
    %387 = arith.index_cast %c21_i32 : i32 to index
    %388 = memref.load %arg2[%387] : memref<32xf32, #tpu.memory_space<smem>>
    %389 = vector.broadcast %388 : f32 to vector<8x128xf32>
    %390 = arith.addf %386, %389 : vector<8x128xf32>
    %391 = arith.index_cast %c21_i32 : i32 to index
    %392 = memref.load %arg3[%391] : memref<32xf32, #tpu.memory_space<smem>>
    %393 = arith.negf %390 : vector<8x128xf32>
    %394 = math.exp %393 : vector<8x128xf32>
    %cst_23 = arith.constant 1.000000e+00 : f32
    %395 = vector.broadcast %cst_23 : f32 to vector<8x128xf32>
    %396 = arith.addf %395, %394 : vector<8x128xf32>
    %397 = arith.divf %395, %396 : vector<8x128xf32>
    %398 = vector.broadcast %392 : f32 to vector<8x128xf32>
    %399 = arith.mulf %398, %397 : vector<8x128xf32>
    %400 = arith.addf %382, %399 : vector<8x128xf32>
    %c22_i32 = arith.constant 22 : i32
    %401 = arith.index_cast %c22_i32 : i32 to index
    %402 = memref.load %arg1[%401] : memref<32xf32, #tpu.memory_space<smem>>
    %403 = vector.broadcast %402 : f32 to vector<8x128xf32>
    %404 = arith.mulf %0, %403 : vector<8x128xf32>
    %405 = arith.index_cast %c22_i32 : i32 to index
    %406 = memref.load %arg2[%405] : memref<32xf32, #tpu.memory_space<smem>>
    %407 = vector.broadcast %406 : f32 to vector<8x128xf32>
    %408 = arith.addf %404, %407 : vector<8x128xf32>
    %409 = arith.index_cast %c22_i32 : i32 to index
    %410 = memref.load %arg3[%409] : memref<32xf32, #tpu.memory_space<smem>>
    %411 = arith.negf %408 : vector<8x128xf32>
    %412 = math.exp %411 : vector<8x128xf32>
    %cst_24 = arith.constant 1.000000e+00 : f32
    %413 = vector.broadcast %cst_24 : f32 to vector<8x128xf32>
    %414 = arith.addf %413, %412 : vector<8x128xf32>
    %415 = arith.divf %413, %414 : vector<8x128xf32>
    %416 = vector.broadcast %410 : f32 to vector<8x128xf32>
    %417 = arith.mulf %416, %415 : vector<8x128xf32>
    %418 = arith.addf %400, %417 : vector<8x128xf32>
    %c23_i32 = arith.constant 23 : i32
    %419 = arith.index_cast %c23_i32 : i32 to index
    %420 = memref.load %arg1[%419] : memref<32xf32, #tpu.memory_space<smem>>
    %421 = vector.broadcast %420 : f32 to vector<8x128xf32>
    %422 = arith.mulf %0, %421 : vector<8x128xf32>
    %423 = arith.index_cast %c23_i32 : i32 to index
    %424 = memref.load %arg2[%423] : memref<32xf32, #tpu.memory_space<smem>>
    %425 = vector.broadcast %424 : f32 to vector<8x128xf32>
    %426 = arith.addf %422, %425 : vector<8x128xf32>
    %427 = arith.index_cast %c23_i32 : i32 to index
    %428 = memref.load %arg3[%427] : memref<32xf32, #tpu.memory_space<smem>>
    %429 = arith.negf %426 : vector<8x128xf32>
    %430 = math.exp %429 : vector<8x128xf32>
    %cst_25 = arith.constant 1.000000e+00 : f32
    %431 = vector.broadcast %cst_25 : f32 to vector<8x128xf32>
    %432 = arith.addf %431, %430 : vector<8x128xf32>
    %433 = arith.divf %431, %432 : vector<8x128xf32>
    %434 = vector.broadcast %428 : f32 to vector<8x128xf32>
    %435 = arith.mulf %434, %433 : vector<8x128xf32>
    %436 = arith.addf %418, %435 : vector<8x128xf32>
    %c24_i32 = arith.constant 24 : i32
    %437 = arith.index_cast %c24_i32 : i32 to index
    %438 = memref.load %arg1[%437] : memref<32xf32, #tpu.memory_space<smem>>
    %439 = vector.broadcast %438 : f32 to vector<8x128xf32>
    %440 = arith.mulf %0, %439 : vector<8x128xf32>
    %441 = arith.index_cast %c24_i32 : i32 to index
    %442 = memref.load %arg2[%441] : memref<32xf32, #tpu.memory_space<smem>>
    %443 = vector.broadcast %442 : f32 to vector<8x128xf32>
    %444 = arith.addf %440, %443 : vector<8x128xf32>
    %445 = arith.index_cast %c24_i32 : i32 to index
    %446 = memref.load %arg3[%445] : memref<32xf32, #tpu.memory_space<smem>>
    %447 = arith.negf %444 : vector<8x128xf32>
    %448 = math.exp %447 : vector<8x128xf32>
    %cst_26 = arith.constant 1.000000e+00 : f32
    %449 = vector.broadcast %cst_26 : f32 to vector<8x128xf32>
    %450 = arith.addf %449, %448 : vector<8x128xf32>
    %451 = arith.divf %449, %450 : vector<8x128xf32>
    %452 = vector.broadcast %446 : f32 to vector<8x128xf32>
    %453 = arith.mulf %452, %451 : vector<8x128xf32>
    %454 = arith.addf %436, %453 : vector<8x128xf32>
    %c25_i32 = arith.constant 25 : i32
    %455 = arith.index_cast %c25_i32 : i32 to index
    %456 = memref.load %arg1[%455] : memref<32xf32, #tpu.memory_space<smem>>
    %457 = vector.broadcast %456 : f32 to vector<8x128xf32>
    %458 = arith.mulf %0, %457 : vector<8x128xf32>
    %459 = arith.index_cast %c25_i32 : i32 to index
    %460 = memref.load %arg2[%459] : memref<32xf32, #tpu.memory_space<smem>>
    %461 = vector.broadcast %460 : f32 to vector<8x128xf32>
    %462 = arith.addf %458, %461 : vector<8x128xf32>
    %463 = arith.index_cast %c25_i32 : i32 to index
    %464 = memref.load %arg3[%463] : memref<32xf32, #tpu.memory_space<smem>>
    %465 = arith.negf %462 : vector<8x128xf32>
    %466 = math.exp %465 : vector<8x128xf32>
    %cst_27 = arith.constant 1.000000e+00 : f32
    %467 = vector.broadcast %cst_27 : f32 to vector<8x128xf32>
    %468 = arith.addf %467, %466 : vector<8x128xf32>
    %469 = arith.divf %467, %468 : vector<8x128xf32>
    %470 = vector.broadcast %464 : f32 to vector<8x128xf32>
    %471 = arith.mulf %470, %469 : vector<8x128xf32>
    %472 = arith.addf %454, %471 : vector<8x128xf32>
    %c26_i32 = arith.constant 26 : i32
    %473 = arith.index_cast %c26_i32 : i32 to index
    %474 = memref.load %arg1[%473] : memref<32xf32, #tpu.memory_space<smem>>
    %475 = vector.broadcast %474 : f32 to vector<8x128xf32>
    %476 = arith.mulf %0, %475 : vector<8x128xf32>
    %477 = arith.index_cast %c26_i32 : i32 to index
    %478 = memref.load %arg2[%477] : memref<32xf32, #tpu.memory_space<smem>>
    %479 = vector.broadcast %478 : f32 to vector<8x128xf32>
    %480 = arith.addf %476, %479 : vector<8x128xf32>
    %481 = arith.index_cast %c26_i32 : i32 to index
    %482 = memref.load %arg3[%481] : memref<32xf32, #tpu.memory_space<smem>>
    %483 = arith.negf %480 : vector<8x128xf32>
    %484 = math.exp %483 : vector<8x128xf32>
    %cst_28 = arith.constant 1.000000e+00 : f32
    %485 = vector.broadcast %cst_28 : f32 to vector<8x128xf32>
    %486 = arith.addf %485, %484 : vector<8x128xf32>
    %487 = arith.divf %485, %486 : vector<8x128xf32>
    %488 = vector.broadcast %482 : f32 to vector<8x128xf32>
    %489 = arith.mulf %488, %487 : vector<8x128xf32>
    %490 = arith.addf %472, %489 : vector<8x128xf32>
    %c27_i32 = arith.constant 27 : i32
    %491 = arith.index_cast %c27_i32 : i32 to index
    %492 = memref.load %arg1[%491] : memref<32xf32, #tpu.memory_space<smem>>
    %493 = vector.broadcast %492 : f32 to vector<8x128xf32>
    %494 = arith.mulf %0, %493 : vector<8x128xf32>
    %495 = arith.index_cast %c27_i32 : i32 to index
    %496 = memref.load %arg2[%495] : memref<32xf32, #tpu.memory_space<smem>>
    %497 = vector.broadcast %496 : f32 to vector<8x128xf32>
    %498 = arith.addf %494, %497 : vector<8x128xf32>
    %499 = arith.index_cast %c27_i32 : i32 to index
    %500 = memref.load %arg3[%499] : memref<32xf32, #tpu.memory_space<smem>>
    %501 = arith.negf %498 : vector<8x128xf32>
    %502 = math.exp %501 : vector<8x128xf32>
    %cst_29 = arith.constant 1.000000e+00 : f32
    %503 = vector.broadcast %cst_29 : f32 to vector<8x128xf32>
    %504 = arith.addf %503, %502 : vector<8x128xf32>
    %505 = arith.divf %503, %504 : vector<8x128xf32>
    %506 = vector.broadcast %500 : f32 to vector<8x128xf32>
    %507 = arith.mulf %506, %505 : vector<8x128xf32>
    %508 = arith.addf %490, %507 : vector<8x128xf32>
    %c28_i32 = arith.constant 28 : i32
    %509 = arith.index_cast %c28_i32 : i32 to index
    %510 = memref.load %arg1[%509] : memref<32xf32, #tpu.memory_space<smem>>
    %511 = vector.broadcast %510 : f32 to vector<8x128xf32>
    %512 = arith.mulf %0, %511 : vector<8x128xf32>
    %513 = arith.index_cast %c28_i32 : i32 to index
    %514 = memref.load %arg2[%513] : memref<32xf32, #tpu.memory_space<smem>>
    %515 = vector.broadcast %514 : f32 to vector<8x128xf32>
    %516 = arith.addf %512, %515 : vector<8x128xf32>
    %517 = arith.index_cast %c28_i32 : i32 to index
    %518 = memref.load %arg3[%517] : memref<32xf32, #tpu.memory_space<smem>>
    %519 = arith.negf %516 : vector<8x128xf32>
    %520 = math.exp %519 : vector<8x128xf32>
    %cst_30 = arith.constant 1.000000e+00 : f32
    %521 = vector.broadcast %cst_30 : f32 to vector<8x128xf32>
    %522 = arith.addf %521, %520 : vector<8x128xf32>
    %523 = arith.divf %521, %522 : vector<8x128xf32>
    %524 = vector.broadcast %518 : f32 to vector<8x128xf32>
    %525 = arith.mulf %524, %523 : vector<8x128xf32>
    %526 = arith.addf %508, %525 : vector<8x128xf32>
    %c29_i32 = arith.constant 29 : i32
    %527 = arith.index_cast %c29_i32 : i32 to index
    %528 = memref.load %arg1[%527] : memref<32xf32, #tpu.memory_space<smem>>
    %529 = vector.broadcast %528 : f32 to vector<8x128xf32>
    %530 = arith.mulf %0, %529 : vector<8x128xf32>
    %531 = arith.index_cast %c29_i32 : i32 to index
    %532 = memref.load %arg2[%531] : memref<32xf32, #tpu.memory_space<smem>>
    %533 = vector.broadcast %532 : f32 to vector<8x128xf32>
    %534 = arith.addf %530, %533 : vector<8x128xf32>
    %535 = arith.index_cast %c29_i32 : i32 to index
    %536 = memref.load %arg3[%535] : memref<32xf32, #tpu.memory_space<smem>>
    %537 = arith.negf %534 : vector<8x128xf32>
    %538 = math.exp %537 : vector<8x128xf32>
    %cst_31 = arith.constant 1.000000e+00 : f32
    %539 = vector.broadcast %cst_31 : f32 to vector<8x128xf32>
    %540 = arith.addf %539, %538 : vector<8x128xf32>
    %541 = arith.divf %539, %540 : vector<8x128xf32>
    %542 = vector.broadcast %536 : f32 to vector<8x128xf32>
    %543 = arith.mulf %542, %541 : vector<8x128xf32>
    %544 = arith.addf %526, %543 : vector<8x128xf32>
    %c30_i32 = arith.constant 30 : i32
    %545 = arith.index_cast %c30_i32 : i32 to index
    %546 = memref.load %arg1[%545] : memref<32xf32, #tpu.memory_space<smem>>
    %547 = vector.broadcast %546 : f32 to vector<8x128xf32>
    %548 = arith.mulf %0, %547 : vector<8x128xf32>
    %549 = arith.index_cast %c30_i32 : i32 to index
    %550 = memref.load %arg2[%549] : memref<32xf32, #tpu.memory_space<smem>>
    %551 = vector.broadcast %550 : f32 to vector<8x128xf32>
    %552 = arith.addf %548, %551 : vector<8x128xf32>
    %553 = arith.index_cast %c30_i32 : i32 to index
    %554 = memref.load %arg3[%553] : memref<32xf32, #tpu.memory_space<smem>>
    %555 = arith.negf %552 : vector<8x128xf32>
    %556 = math.exp %555 : vector<8x128xf32>
    %cst_32 = arith.constant 1.000000e+00 : f32
    %557 = vector.broadcast %cst_32 : f32 to vector<8x128xf32>
    %558 = arith.addf %557, %556 : vector<8x128xf32>
    %559 = arith.divf %557, %558 : vector<8x128xf32>
    %560 = vector.broadcast %554 : f32 to vector<8x128xf32>
    %561 = arith.mulf %560, %559 : vector<8x128xf32>
    %562 = arith.addf %544, %561 : vector<8x128xf32>
    %c31_i32 = arith.constant 31 : i32
    %563 = arith.index_cast %c31_i32 : i32 to index
    %564 = memref.load %arg1[%563] : memref<32xf32, #tpu.memory_space<smem>>
    %565 = vector.broadcast %564 : f32 to vector<8x128xf32>
    %566 = arith.mulf %0, %565 : vector<8x128xf32>
    %567 = arith.index_cast %c31_i32 : i32 to index
    %568 = memref.load %arg2[%567] : memref<32xf32, #tpu.memory_space<smem>>
    %569 = vector.broadcast %568 : f32 to vector<8x128xf32>
    %570 = arith.addf %566, %569 : vector<8x128xf32>
    %571 = arith.index_cast %c31_i32 : i32 to index
    %572 = memref.load %arg3[%571] : memref<32xf32, #tpu.memory_space<smem>>
    %573 = arith.negf %570 : vector<8x128xf32>
    %574 = math.exp %573 : vector<8x128xf32>
    %cst_33 = arith.constant 1.000000e+00 : f32
    %575 = vector.broadcast %cst_33 : f32 to vector<8x128xf32>
    %576 = arith.addf %575, %574 : vector<8x128xf32>
    %577 = arith.divf %575, %576 : vector<8x128xf32>
    %578 = vector.broadcast %572 : f32 to vector<8x128xf32>
    %579 = arith.mulf %578, %577 : vector<8x128xf32>
    %580 = arith.addf %562, %579 : vector<8x128xf32>
    %c32_i32 = arith.constant 32 : i32
    %c0_34 = arith.constant 0 : index
    %c0_35 = arith.constant 0 : index
    %581 = vector.load %arg6[%c0_34, %c0_35] : memref<8x128xf32, #tpu.memory_space<vmem>>, vector<8x128xf32>
    tpu.vector_store %arg6[%c0_34, %c0_35], %580 {strides = array<i32>} : memref<8x128xf32, #tpu.memory_space<vmem>>, vector<8x128xf32>,
    return
  }
  func.func @transform_0(%arg0: i32) -> i32 {
    %c0_i32 = arith.constant 0 : i32
    %c0_i32_0 = arith.constant 0 : i32
    return %c0_i32 : i32
  }
  func.func @transform_1(%arg0: i32) -> i32 {
    %c0_i32 = arith.constant 0 : i32
    %c0_i32_0 = arith.constant 0 : i32
    return %c0_i32 : i32
  }
  func.func @transform_2(%arg0: i32) -> i32 {
    %c0_i32 = arith.constant 0 : i32
    %c0_i32_0 = arith.constant 0 : i32
    return %c0_i32 : i32
  }
  func.func @transform_3(%arg0: i32) -> i32 {
    %c0_i32 = arith.constant 0 : i32
    %c0_i32_0 = arith.constant 0 : i32
    return %c0_i32 : i32
  }
  func.func @transform_4(%arg0: i32) -> (i32, i32) {
    %c0_i32 = arith.constant 0 : i32
    %c0_i32_0 = arith.constant 0 : i32
    return %arg0, %c0_i32 : i32, i32
  }
  func.func @transform_5(%arg0: i32) -> (i32, i32) {
    %c0_i32 = arith.constant 0 : i32
    %c0_i32_0 = arith.constant 0 : i32
    return %arg0, %c0_i32 : i32, i32
  }
}

</mosaic_0001>

<llo_original>
// kernel: tpu_custom_call.1
$region0: #{tpu_custom_call.1}
  #allocation0 [shape = 'u32[]', space=smem, size = 0x4, offset = 0x4, fixed_abs, tag = 'smem constant byte address 0x4 - core index']
  #allocation1 [shape = 'u32[72,128]{1,0:T(1,128)}', space=vmem, size = 0x9000, scoped, tag = 'internal scratch']
  #allocation2 [shape = 'f32[1]{0:T(128)S(6)}', space=smem, size = 0x200, scoped, tag = 'scoped memory for tpu_custom_call.1']
  %s0 = inlined_call_operand.vmem [shape: f32[32], index: 0, kind: input, shape index: {}]
  %s1 = inlined_call_operand.vmem [shape: f32[32], index: 1, kind: input, shape index: {}]
  %s2 = inlined_call_operand.vmem [shape: f32[32], index: 2, kind: input, shape index: {}]
  %s3 = inlined_call_operand.<no memory space> [shape: f32[1], index: 3, kind: input, shape index: {}]
  %s4 = inlined_call_operand.hbm [shape: f32[24,128], index: 4, kind: input, shape index: {}]
  %s5 = inlined_call_operand.hbm [shape: f32[24,128], index: 5, kind: output, shape index: {}]
  %s6 = sld [smem:[#allocation0]]
  $region69: #{tpu_custom_call.1} parent=0
    _
  %s8 = ssub.s32 1, %s6
  %s9 = scalar_select 0, %s8, %s6
  %10 = sst [smem:[#allocation2]] %s3
  $region1: #{tpu_custom_call.1} parent=0
    #allocation3 [shape = 'u8[512]{0}', space=smem, size = 0x200, scoped, tag = 'input window, operand 0, single buffered']
    #allocation4 [shape = 's32[2]{0}', space=sflag, size = 0x8, scoped, tag = 'scoped memory for tpu_custom_call.1']
    #allocation5 [shape = 's32[2]{0}', space=sflag, size = 0x8, scoped, tag = 'scoped memory for tpu_custom_call.1']
    #allocation6 [shape = 's32[2]{0}', space=sflag, size = 0x8, scoped, tag = 'scoped memory for tpu_custom_call.1']
    #allocation7 [shape = 'u8[512]{0}', space=smem, size = 0x200, scoped, tag = 'input window, operand 1, single buffered']
    #allocation8 [shape = 's32[1]{0}', space=sflag, size = 0x4, scoped, tag = 'scoped memory for tpu_custom_call.1']
    #allocation9 [shape = 'u8[512]{0}', space=smem, size = 0x200, scoped, tag = 'input window, operand 2, single buffered']
    #allocation10 [shape = 'u8[8192]{0}', space=vmem, size = 0x2000, scoped, tag = 'input window, operand 4']
    #allocation11 [shape = 'u8[8192]{0}', space=vmem, size = 0x2000, scoped, tag = 'output window, operand 0']
    %11 = vsyncpa [#allocation6], 0
    %12 = vsyncpa [#allocation8], 0
    %13 = vsyncpa [#allocation4], 0
    %s14 = scalar_lea.sflag [#allocation4], 1
    %15 = vsyncpa %s14, 0
    %16 = vsyncpa [#allocation5], 0
    %s17 = scalar_lea.sflag [#allocation5], 1
    %18 = vsyncpa %s17, 0
    loop: start=0, step=1, limit=5
    $region2: #{tpu_custom_call.1} parent=1 // loop_pre_header
      _
    $region3: #{tpu_custom_call.1} parent=1 // loop_header
      %s20 = sphi 0, %s24
      %p21 = scmp.ge.s32.totalorder %s20, 5
      %s28 = sphi 0, %s28
      %s30 = sphi 0, %s28
      %s31 = sphi 0, %s30
      %s45 = sphi 0, %s31
      %s49 = sphi 0, %s49
      %s51 = sphi 0, %s49
      %s52 = sphi 0, %s51
      %s66 = sphi 0, %s52
      %s70 = sphi 0, %s70
      %s72 = sphi 0, %s70
      %s73 = sphi 0, %s72
      %s87 = sphi 0, %s73
      %s91 = sphi 0, %s91
      %s93 = sphi 0, %s91
      %s94 = sphi 0, %s93
      %s108 = sphi 0, %s94
      %s114 = sphi 0, %s116
      %s117 = sphi 0, %s114
      %s118 = sphi 0, %s117
      %s134 = sphi 0, %s118
      %s140 = sphi 0, %s142
      %s143 = sphi 0, %s140
      %s144 = sphi 0, %s143
      %s160 = sphi 0, %s144
    $region4: #{tpu_custom_call.1} parent=1 // loop_header_branch
      %23 = sbr.rel (%p21) target = $region8
    $region5: #{tpu_custom_call.1} parent=1 // loop_body
      %s25 = ssub.s32 %s20, 1
      %s26 = ssub.s32 %s20, 2
      %s27 = sadd.s32 %s20, 1
      %s29 = sadd.s32 %s28, 1
      %p32 = scmp.eq.s32.totalorder %s20, 2
      %p33 = scmp.ne.s32.totalorder %s28, %s30
      %p34 = scmp.eq.s32.totalorder %s20, 0
      %p35 = por %p33, %p34
      %p36 = scmp.ne.s32.totalorder %s28, %s30
      %p37 = scmp.eq.s32.totalorder %s25, 2
      %p38 = por %p36, %p37
      %p39 = scmp.ne.s32.totalorder %s30, %s31
      %p40 = scmp.eq.s32.totalorder %s25, 0
      %p41 = por %p39, %p40
      %p42 = scmp.ne.s32.totalorder %s30, %s31
      %p43 = scmp.eq.s32.totalorder %s26, 2
      %p44 = por %p42, %p43
      %p46 = scmp.ne.s32.totalorder %s31, %s45
      %p47 = scmp.eq.s32.totalorder %s26, 0
      %p48 = por %p46, %p47
      %s50 = sadd.s32 %s49, 1
      %p53 = scmp.eq.s32.totalorder %s20, 2
      %p54 = scmp.ne.s32.totalorder %s49, %s51
      %p55 = scmp.eq.s32.totalorder %s20, 0
      %p56 = por %p54, %p55
      %p57 = scmp.ne.s32.totalorder %s49, %s51
      %p58 = scmp.eq.s32.totalorder %s25, 2
      %p59 = por %p57, %p58
      %p60 = scmp.ne.s32.totalorder %s51, %s52
      %p61 = scmp.eq.s32.totalorder %s25, 0
      %p62 = por %p60, %p61
      %p63 = scmp.ne.s32.totalorder %s51, %s52
      %p64 = scmp.eq.s32.totalorder %s26, 2
      %p65 = por %p63, %p64
      %p67 = scmp.ne.s32.totalorder %s52, %s66
      %p68 = scmp.eq.s32.totalorder %s26, 0
      %p69 = por %p67, %p68
      %s71 = sadd.s32 %s70, 1
      %p74 = scmp.eq.s32.totalorder %s20, 2
      %p75 = scmp.ne.s32.totalorder %s70, %s72
      %p76 = scmp.eq.s32.totalorder %s20, 0
      %p77 = por %p75, %p76
      %p78 = scmp.ne.s32.totalorder %s70, %s72
      %p79 = scmp.eq.s32.totalorder %s25, 2
      %p80 = por %p78, %p79
      %p81 = scmp.ne.s32.totalorder %s72, %s73
      %p82 = scmp.eq.s32.totalorder %s25, 0
      %p83 = por %p81, %p82
      %p84 = scmp.ne.s32.totalorder %s72, %s73
      %p85 = scmp.eq.s32.totalorder %s26, 2
      %p86 = por %p84, %p85
      %p88 = scmp.ne.s32.totalorder %s73, %s87
      %p89 = scmp.eq.s32.totalorder %s26, 0
      %p90 = por %p88, %p89
      %s92 = sadd.s32 %s91, 1
      %p95 = scmp.eq.s32.totalorder %s20, 2
      %p96 = scmp.ne.s32.totalorder %s91, %s93
      %p97 = scmp.eq.s32.totalorder %s20, 0
      %p98 = por %p96, %p97
      %p99 = scmp.ne.s32.totalorder %s91, %s93
      %p100 = scmp.eq.s32.totalorder %s25, 2
      %p101 = por %p99, %p100
      %p102 = scmp.ne.s32.totalorder %s93, %s94
      %p103 = scmp.eq.s32.totalorder %s25, 0
      %p104 = por %p102, %p103
      %p105 = scmp.ne.s32.totalorder %s93, %s94
      %p106 = scmp.eq.s32.totalorder %s26, 2
      %p107 = por %p105, %p106
      %p109 = scmp.ne.s32.totalorder %s94, %s108
      %p110 = scmp.eq.s32.totalorder %s26, 0
      %p111 = por %p109, %p110
      %s112 = ssub.s32 %s20, %s27
      %p113 = scmp.eq.s32.totalorder %s112, 0
      %s115 = sadd.s32 %s114, 1
      %s116 = scalar_select %p113, %s114, %s115
      %p119 = pneg %p113
      %p120 = scmp.eq.s32.totalorder %s20, 2
      %p121 = por %p119, %p120
      %p122 = scmp.ne.s32.totalorder %s114, %s117
      %p123 = scmp.eq.s32.totalorder %s20, 0
      %p124 = por %p122, %p123
      %p125 = scmp.ne.s32.totalorder %s114, %s117
      %p126 = scmp.eq.s32.totalorder %s25, 2
      %p127 = por %p125, %p126
      %p128 = scmp.ne.s32.totalorder %s117, %s118
      %p129 = scmp.eq.s32.totalorder %s25, 0
      %p130 = por %p128, %p129
      %p131 = scmp.ne.s32.totalorder %s117, %s118
      %p132 = scmp.eq.s32.totalorder %s26, 2
      %p133 = por %p131, %p132
      %p135 = scmp.ne.s32.totalorder %s118, %s134
      %p136 = scmp.eq.s32.totalorder %s26, 0
      %p137 = por %p135, %p136
      %s138 = ssub.s32 %s20, %s27
      %p139 = scmp.eq.s32.totalorder %s138, 0
      %s141 = sadd.s32 %s140, 1
      %s142 = scalar_select %p139, %s140, %s141
      %p145 = pneg %p139
      %p146 = scmp.eq.s32.totalorder %s20, 2
      %p147 = por %p145, %p146
      %p148 = scmp.ne.s32.totalorder %s140, %s143
      %p149 = scmp.eq.s32.totalorder %s20, 0
      %p150 = por %p148, %p149
      %p151 = scmp.ne.s32.totalorder %s140, %s143
      %p152 = scmp.eq.s32.totalorder %s25, 2
      %p153 = por %p151, %p152
      %p154 = scmp.ne.s32.totalorder %s143, %s144
      %p155 = scmp.eq.s32.totalorder %s25, 0
      %p156 = por %p154, %p155
      %p157 = scmp.ne.s32.totalorder %s143, %s144
      %p158 = scmp.eq.s32.totalorder %s26, 2
      %p159 = por %p157, %p158
      %p161 = scmp.ne.s32.totalorder %s144, %s160
      %p162 = scmp.eq.s32.totalorder %s26, 0
      %p163 = por %p161, %p162
      %p164 = scmp.le.s32.totalorder 1, %s20
      %p165 = scmp.lt.s32.totalorder %s20, 4
      %p166 = pnand %p164, %p165
      %p167 = pneg %p166
      // Predicated region
      $region9: #{tpu_custom_call.1} parent=5 // pred_check
        _
      $region10: #{tpu_custom_call.1} parent=5 // pred_check_branch
        %169 = sbr.rel (%p166) target = $region12
      $region11: #{tpu_custom_call.1} parent=5 // pred_region
        %s170 = ssub.s32 %s20, 1
        // Predicated region
        $region13: #{tpu_custom_call.1} parent=11 // pred_check
          %p171 = pneg %p41
        $region14: #{tpu_custom_call.1} parent=11 // pred_check_branch
          %173 = sbr.rel (%p171) target = $region16
        $region15: #{tpu_custom_call.1} parent=11 // pred_region
          %175 = vsyncadd [#allocation6], 0
          %s177 = sshll.u32 %s0, 4
          %s178 = int_to_ptr.vmem [resolvable:$true] %s177
          %180 = dma.vmem_to_smem %s178, 16, [#allocation3], [#allocation6]
        $region16: #{tpu_custom_call.1} parent=11 // pred_fallthru
          _
        // Predicated region
        $region17: #{tpu_custom_call.1} parent=11 // pred_check
          %p181 = pneg %p62
        $region18: #{tpu_custom_call.1} parent=11 // pred_check_branch
          %183 = sbr.rel (%p181) target = $region20
        $region19: #{tpu_custom_call.1} parent=11 // pred_region
          %185 = vsyncadd [#allocation8], 0
          %s187 = sshll.u32 %s1, 4
          %s188 = int_to_ptr.vmem [resolvable:$true] %s187
          %190 = dma.vmem_to_smem %s188, 16, [#allocation7], [#allocation8]
        $region20: #{tpu_custom_call.1} parent=11 // pred_fallthru
          _
        // Predicated region
        $region21: #{tpu_custom_call.1} parent=11 // pred_check
          %p191 = pneg %p83
        $region22: #{tpu_custom_call.1} parent=11 // pred_check_branch
          %193 = sbr.rel (%p191) target = $region24
        $region23: #{tpu_custom_call.1} parent=11 // pred_region
          %195 = vsyncadd [#allocation8], 0
          %s197 = sshll.u32 %s2, 4
          %s198 = int_to_ptr.vmem [resolvable:$true] %s197
          %200 = dma.vmem_to_smem %s198, 16, [#allocation9], [#allocation8]
        $region24: #{tpu_custom_call.1} parent=11 // pred_fallthru
          _
        // Predicated region
        $region25: #{tpu_custom_call.1} parent=11 // pred_check
          %p201 = pneg %p104
        $region26: #{tpu_custom_call.1} parent=11 // pred_check_branch
          %203 = sbr.rel (%p201) target = $region28
        $region27: #{tpu_custom_call.1} parent=11 // pred_region
          _
        $region28: #{tpu_custom_call.1} parent=11 // pred_fallthru
          _
      $region12: #{tpu_custom_call.1} parent=5 // pred_fallthru
        _
      %p204 = scmp.lt.s32.totalorder %s20, 3
      // Predicated region
      $region29: #{tpu_custom_call.1} parent=5 // pred_check
        %p205 = pneg %p204
      $region30: #{tpu_custom_call.1} parent=5 // pred_check_branch
        %207 = sbr.rel (%p205) target = $region32
      $region31: #{tpu_custom_call.1} parent=5 // pred_region
        // Predicated region
        $region33: #{tpu_custom_call.1} parent=31 // pred_check
          %p208 = pneg %p124
        $region34: #{tpu_custom_call.1} parent=31 // pred_check_branch
          %210 = sbr.rel (%p208) target = $region36
        $region35: #{tpu_custom_call.1} parent=31 // pred_region
          %s211 = sand.u32 %s114, 1
          %s212 = scalar_lea.sflag [#allocation4], %s211
          %s213 = sand.u32 %s114, 1
          %s214 = smul.addr %s213, 8
          %s215 = scalar_lea.vmem [#allocation10], %s214
          %217 = vsyncadd %s212, 0
          %s218 = smul.addr %s20, 8
          %s219 = scalar_lea.hbm %s4, %s218
          %s221 = sshll.u32 %s219, 4
          %s222 = int_to_ptr.hbm [resolvable:$true] %s221
          %s223 = sshll.u32 %s215, 4
          %s224 = int_to_ptr.vmem [resolvable:$true] %s223
          %226 = dma.hbm_to_vmem [thread:$0]  %s222, 128, %s224, %s212
        $region36: #{tpu_custom_call.1} parent=31 // pred_fallthru
          _
      $region32: #{tpu_custom_call.1} parent=5 // pred_fallthru
        _
      %p227 = scmp.le.s32.totalorder 1, %s20
      %p228 = scmp.lt.s32.totalorder %s20, 4
      %p229 = pnand %p227, %p228
      %p230 = pneg %p229
      // Predicated region
      $region37: #{tpu_custom_call.1} parent=5 // pred_check
        _
      $region38: #{tpu_custom_call.1} parent=5 // pred_check_branch
        %232 = sbr.rel (%p229) target = $region40
      $region39: #{tpu_custom_call.1} parent=5 // pred_region
        %s233 = ssub.s32 %s20, 1
        // Predicated region
        $region41: #{tpu_custom_call.1} parent=39 // pred_check
          %p234 = pneg %p41
        $region42: #{tpu_custom_call.1} parent=39 // pred_check_branch
          %236 = sbr.rel (%p234) target = $region44
        $region43: #{tpu_custom_call.1} parent=39 // pred_region
          %238 = dma.done [#allocation6], 16
        $region44: #{tpu_custom_call.1} parent=39 // pred_fallthru
          _
        // Predicated region
        $region45: #{tpu_custom_call.1} parent=39 // pred_check
          %p239 = pneg %p62
        $region46: #{tpu_custom_call.1} parent=39 // pred_check_branch
          %241 = sbr.rel (%p239) target = $region48
        $region47: #{tpu_custom_call.1} parent=39 // pred_region
          %243 = dma.done [#allocation8], 16
        $region48: #{tpu_custom_call.1} parent=39 // pred_fallthru
          _
        // Predicated region
        $region49: #{tpu_custom_call.1} parent=39 // pred_check
          %p244 = pneg %p83
        $region50: #{tpu_custom_call.1} parent=39 // pred_check_branch
          %246 = sbr.rel (%p244) target = $region52
        $region51: #{tpu_custom_call.1} parent=39 // pred_region
          %248 = dma.done [#allocation8], 16
        $region52: #{tpu_custom_call.1} parent=39 // pred_fallthru
          _
        %s249 = sand.u32 %s117, 1
        %s250 = scalar_lea.sflag [#allocation4], %s249
        %s251 = sand.u32 %s117, 1
        %s252 = smul.addr %s251, 8
        %s253 = scalar_lea.vmem [#allocation10], %s252
        // Predicated region
        $region53: #{tpu_custom_call.1} parent=39 // pred_check
          %p254 = pneg %p130
        $region54: #{tpu_custom_call.1} parent=39 // pred_check_branch
          %256 = sbr.rel (%p254) target = $region56
        $region55: #{tpu_custom_call.1} parent=39 // pred_region
          %258 = dma.done %s250, 128
        $region56: #{tpu_custom_call.1} parent=39 // pred_fallthru
          _
        %259 = sfence
        %p260 = pneg %p41
        %p261 = pneg %p38
        %p262 = pneg %p62
        %p263 = pneg %p59
        %p264 = pneg %p83
        %p265 = pneg %p80
        %p266 = pneg %p104
        %p267 = pneg %p101
        %s268 = sand.u32 %s117, 1
        %s269 = scalar_lea.sflag [#allocation4], %s268
        %s270 = sand.u32 %s117, 1
        %s271 = smul.addr %s270, 8
        %s272 = scalar_lea.vmem [#allocation10], %s271
        %p273 = pneg %p130
        %p274 = pneg %p127
        %p275 = pneg %p156
        %p276 = pneg %p153
        %s277 = sand.u32 %s143, 1
        %s278 = scalar_lea.sflag [#allocation5], %s277
        %s279 = sand.u32 %s143, 1
        %s280 = smul.addr %s279, 8
        %s281 = scalar_lea.vmem [#allocation11], %s280
        %v282 = vld [vmem:[%s253] sm:$0xff]
        %s283 = sld [smem:[#allocation2]]
        %v284 = vstv %s283
        %v285 = vadd.f32 %v284, 0.0
        %s286 = sld [smem:[#allocation3]]
        %v287 = vstv %s286
        %v288 = vmul.f32 %v282, %v287
        %s289 = sld [smem:[#allocation7]]
        %v290 = vstv %s289
        %v291 = vadd.f32 %v288, %v290
        %s292 = sld [smem:[#allocation9]]
        %v293 = vxor.u32 %v291, 2147483648
        %v294 = vmul.f32 %v293, 1.442695
        %v295 = vpow.pop %v294
        %v296 = vadd.f32 %v295, 1.0
        %v297 = vrcp.pop %v296
        %v298 = vmul.f32 %v296, %v297
        %v299 = vsub.f32 1.0, %v298
        %v300 = vmul.f32 %v297, %v299
        %v301 = vadd.f32 %v297, %v300
        %vm302 = vweird.f32 %v296
        %vm303 = vweird.f32 %v297
        %vm304 = vmor %vm302, %vm303
        %v305 = vsel %vm304, %v297, %v301
        %v306 = vand.u32 2147483647, %v296
        %vm307 = vcmp.eq.f32.partialorder %v306, 8.507059e+37
        %v308 = vand.u32 %v296, 2147483648
        %v309 = vor.u32 1.1754944e-38, %v308
        %v310 = vsel %vm307, %v309, %v305
        %v311 = vmul.f32 1.0, %v310
        %v312 = vstv %s292
        %v313 = vmul.f32 %v312, %v311
        %v314 = vadd.f32 %v285, %v313
        %s315 = sld [smem:[#allocation3 + $0x1]]
        %v316 = vstv %s315
        %v317 = vmul.f32 %v282, %v316
        %s318 = sld [smem:[#allocation7 + $0x1]]
        %v319 = vstv %s318
        %v320 = vadd.f32 %v317, %v319
        %s321 = sld [smem:[#allocation9 + $0x1]]
        %v322 = vxor.u32 %v320, 2147483648
        %v323 = vmul.f32 %v322, 1.442695
        %v324 = vpow.pop %v323
        %v325 = vadd.f32 %v324, 1.0
        %v326 = vrcp.pop %v325
        %v327 = vmul.f32 %v325, %v326
        %v328 = vsub.f32 1.0, %v327
        %v329 = vmul.f32 %v326, %v328
        %v330 = vadd.f32 %v326, %v329
        %vm331 = vweird.f32 %v325
        %vm332 = vweird.f32 %v326
        %vm333 = vmor %vm331, %vm332
        %v334 = vsel %vm333, %v326, %v330
        %v335 = vand.u32 2147483647, %v325
        %vm336 = vcmp.eq.f32.partialorder %v335, 8.507059e+37
        %v337 = vand.u32 %v325, 2147483648
        %v338 = vor.u32 1.1754944e-38, %v337
        %v339 = vsel %vm336, %v338, %v334
        %v340 = vmul.f32 1.0, %v339
        %v341 = vstv %s321
        %v342 = vmul.f32 %v341, %v340
        %v343 = vadd.f32 %v314, %v342
        %s344 = sld [smem:[#allocation3 + $0x2]]
        %v345 = vstv %s344
        %v346 = vmul.f32 %v282, %v345
        %s347 = sld [smem:[#allocation7 + $0x2]]
        %v348 = vstv %s347
        %v349 = vadd.f32 %v346, %v348
        %s350 = sld [smem:[#allocation9 + $0x2]]
        %v351 = vxor.u32 %v349, 2147483648
        %v352 = vmul.f32 %v351, 1.442695
        %v353 = vpow.pop %v352
        %v354 = vadd.f32 %v353, 1.0
        %v355 = vrcp.pop %v354
        %v356 = vmul.f32 %v354, %v355
        %v357 = vsub.f32 1.0, %v356
        %v358 = vmul.f32 %v355, %v357
        %v359 = vadd.f32 %v355, %v358
        %vm360 = vweird.f32 %v354
        %vm361 = vweird.f32 %v355
        %vm362 = vmor %vm360, %vm361
        %v363 = vsel %vm362, %v355, %v359
        %v364 = vand.u32 2147483647, %v354
        %vm365 = vcmp.eq.f32.partialorder %v364, 8.507059e+37
        %v366 = vand.u32 %v354, 2147483648
        %v367 = vor.u32 1.1754944e-38, %v366
        %v368 = vsel %vm365, %v367, %v363
        %v369 = vmul.f32 1.0, %v368
        %v370 = vstv %s350
        %v371 = vmul.f32 %v370, %v369
        %v372 = vadd.f32 %v343, %v371
        %s373 = sld [smem:[#allocation3 + $0x3]]
        %v374 = vstv %s373
        %v375 = vmul.f32 %v282, %v374
        %s376 = sld [smem:[#allocation7 + $0x3]]
        %v377 = vstv %s376
        %v378 = vadd.f32 %v375, %v377
        %s379 = sld [smem:[#allocation9 + $0x3]]
        %v380 = vxor.u32 %v378, 2147483648
        %v381 = vmul.f32 %v380, 1.442695
        %v382 = vpow.pop %v381
        %v383 = vadd.f32 %v382, 1.0
        %v384 = vrcp.pop %v383
        %v385 = vmul.f32 %v383, %v384
        %v386 = vsub.f32 1.0, %v385
        %v387 = vmul.f32 %v384, %v386
        %v388 = vadd.f32 %v384, %v387
        %vm389 = vweird.f32 %v383
        %vm390 = vweird.f32 %v384
        %vm391 = vmor %vm389, %vm390
        %v392 = vsel %vm391, %v384, %v388
        %v393 = vand.u32 2147483647, %v383
        %vm394 = vcmp.eq.f32.partialorder %v393, 8.507059e+37
        %v395 = vand.u32 %v383, 2147483648
        %v396 = vor.u32 1.1754944e-38, %v395
        %v397 = vsel %vm394, %v396, %v392
        %v398 = vmul.f32 1.0, %v397
        %v399 = vstv %s379
        %v400 = vmul.f32 %v399, %v398
        %v401 = vadd.f32 %v372, %v400
        %s402 = sld [smem:[#allocation3 + $0x4]]
        %v403 = vstv %s402
        %v404 = vmul.f32 %v282, %v403
        %s405 = sld [smem:[#allocation7 + $0x4]]
        %v406 = vstv %s405
        %v407 = vadd.f32 %v404, %v406
        %s408 = sld [smem:[#allocation9 + $0x4]]
        %v409 = vxor.u32 %v407, 2147483648
        %v410 = vmul.f32 %v409, 1.442695
        %v411 = vpow.pop %v410
        %v412 = vadd.f32 %v411, 1.0
        %v413 = vrcp.pop %v412
        %v414 = vmul.f32 %v412, %v413
        %v415 = vsub.f32 1.0, %v414
        %v416 = vmul.f32 %v413, %v415
        %v417 = vadd.f32 %v413, %v416
        %vm418 = vweird.f32 %v412
        %vm419 = vweird.f32 %v413
        %vm420 = vmor %vm418, %vm419
        %v421 = vsel %vm420, %v413, %v417
        %v422 = vand.u32 2147483647, %v412
        %vm423 = vcmp.eq.f32.partialorder %v422, 8.507059e+37
        %v424 = vand.u32 %v412, 2147483648
        %v425 = vor.u32 1.1754944e-38, %v424
        %v426 = vsel %vm423, %v425, %v421
        %v427 = vmul.f32 1.0, %v426
        %v428 = vstv %s408
        %v429 = vmul.f32 %v428, %v427
        %v430 = vadd.f32 %v401, %v429
        %s431 = sld [smem:[#allocation3 + $0x5]]
        %v432 = vstv %s431
        %v433 = vmul.f32 %v282, %v432
        %s434 = sld [smem:[#allocation7 + $0x5]]
        %v435 = vstv %s434
        %v436 = vadd.f32 %v433, %v435
        %s437 = sld [smem:[#allocation9 + $0x5]]
        %v438 = vxor.u32 %v436, 2147483648
        %v439 = vmul.f32 %v438, 1.442695
        %v440 = vpow.pop %v439
        %v441 = vadd.f32 %v440, 1.0
        %v442 = vrcp.pop %v441
        %v443 = vmul.f32 %v441, %v442
        %v444 = vsub.f32 1.0, %v443
        %v445 = vmul.f32 %v442, %v444
        %v446 = vadd.f32 %v442, %v445
        %vm447 = vweird.f32 %v441
        %vm448 = vweird.f32 %v442
        %vm449 = vmor %vm447, %vm448
        %v450 = vsel %vm449, %v442, %v446
        %v451 = vand.u32 2147483647, %v441
        %vm452 = vcmp.eq.f32.partialorder %v451, 8.507059e+37
        %v453 = vand.u32 %v441, 2147483648
        %v454 = vor.u32 1.1754944e-38, %v453
        %v455 = vsel %vm452, %v454, %v450
        %v456 = vmul.f32 1.0, %v455
        %v457 = vstv %s437
        %v458 = vmul.f32 %v457, %v456
        %v459 = vadd.f32 %v430, %v458
        %s460 = sld [smem:[#allocation3 + $0x6]]
        %v461 = vstv %s460
        %v462 = vmul.f32 %v282, %v461
        %s463 = sld [smem:[#allocation7 + $0x6]]
        %v464 = vstv %s463
        %v465 = vadd.f32 %v462, %v464
        %s466 = sld [smem:[#allocation9 + $0x6]]
        %v467 = vxor.u32 %v465, 2147483648
        %v468 = vmul.f32 %v467, 1.442695
        %v469 = vpow.pop %v468
        %v470 = vadd.f32 %v469, 1.0
        %v471 = vrcp.pop %v470
        %v472 = vmul.f32 %v470, %v471
        %v473 = vsub.f32 1.0, %v472
        %v474 = vmul.f32 %v471, %v473
        %v475 = vadd.f32 %v471, %v474
        %vm476 = vweird.f32 %v470
        %vm477 = vweird.f32 %v471
        %vm478 = vmor %vm476, %vm477
        %v479 = vsel %vm478, %v471, %v475
        %v480 = vand.u32 2147483647, %v470
        %vm481 = vcmp.eq.f32.partialorder %v480, 8.507059e+37
        %v482 = vand.u32 %v470, 2147483648
        %v483 = vor.u32 1.1754944e-38, %v482
        %v484 = vsel %vm481, %v483, %v479
        %v485 = vmul.f32 1.0, %v484
        %v486 = vstv %s466
        %v487 = vmul.f32 %v486, %v485
        %v488 = vadd.f32 %v459, %v487
        %s489 = sld [smem:[#allocation3 + $0x7]]
        %v490 = vstv %s489
        %v491 = vmul.f32 %v282, %v490
        %s492 = sld [smem:[#allocation7 + $0x7]]
        %v493 = vstv %s492
        %v494 = vadd.f32 %v491, %v493
        %s495 = sld [smem:[#allocation9 + $0x7]]
        %v496 = vxor.u32 %v494, 2147483648
        %v497 = vmul.f32 %v496, 1.442695
        %v498 = vpow.pop %v497
        %v499 = vadd.f32 %v498, 1.0
        %v500 = vrcp.pop %v499
        %v501 = vmul.f32 %v499, %v500
        %v502 = vsub.f32 1.0, %v501
        %v503 = vmul.f32 %v500, %v502
        %v504 = vadd.f32 %v500, %v503
        %vm505 = vweird.f32 %v499
        %vm506 = vweird.f32 %v500
        %vm507 = vmor %vm505, %vm506
        %v508 = vsel %vm507, %v500, %v504
        %v509 = vand.u32 2147483647, %v499
        %vm510 = vcmp.eq.f32.partialorder %v509, 8.507059e+37
        %v511 = vand.u32 %v499, 2147483648
        %v512 = vor.u32 1.1754944e-38, %v511
        %v513 = vsel %vm510, %v512, %v508
        %v514 = vmul.f32 1.0, %v513
        %v515 = vstv %s495
        %v516 = vmul.f32 %v515, %v514
        %v517 = vadd.f32 %v488, %v516
        %s518 = sld [smem:[#allocation3 + $0x8]]
        %v519 = vstv %s518
        %v520 = vmul.f32 %v282, %v519
        %s521 = sld [smem:[#allocation7 + $0x8]]
        %v522 = vstv %s521
        %v523 = vadd.f32 %v520, %v522
        %s524 = sld [smem:[#allocation9 + $0x8]]
        %v525 = vxor.u32 %v523, 2147483648
        %v526 = vmul.f32 %v525, 1.442695
        %v527 = vpow.pop %v526
        %v528 = vadd.f32 %v527, 1.0
        %v529 = vrcp.pop %v528
        %v530 = vmul.f32 %v528, %v529
        %v531 = vsub.f32 1.0, %v530
        %v532 = vmul.f32 %v529, %v531
        %v533 = vadd.f32 %v529, %v532
        %vm534 = vweird.f32 %v528
        %vm535 = vweird.f32 %v529
        %vm536 = vmor %vm534, %vm535
        %v537 = vsel %vm536, %v529, %v533
        %v538 = vand.u32 2147483647, %v528
        %vm539 = vcmp.eq.f32.partialorder %v538, 8.507059e+37
        %v540 = vand.u32 %v528, 2147483648
        %v541 = vor.u32 1.1754944e-38, %v540
        %v542 = vsel %vm539, %v541, %v537
        %v543 = vmul.f32 1.0, %v542
        %v544 = vstv %s524
        %v545 = vmul.f32 %v544, %v543
        %v546 = vadd.f32 %v517, %v545
        %s547 = sld [smem:[#allocation3 + $0x9]]
        %v548 = vstv %s547
        %v549 = vmul.f32 %v282, %v548
        %s550 = sld [smem:[#allocation7 + $0x9]]
        %v551 = vstv %s550
        %v552 = vadd.f32 %v549, %v551
        %s553 = sld [smem:[#allocation9 + $0x9]]
        %v554 = vxor.u32 %v552, 2147483648
        %v555 = vmul.f32 %v554, 1.442695
        %v556 = vpow.pop %v555
        %v557 = vadd.f32 %v556, 1.0
        %v558 = vrcp.pop %v557
        %v559 = vmul.f32 %v557, %v558
        %v560 = vsub.f32 1.0, %v559
        %v561 = vmul.f32 %v558, %v560
        %v562 = vadd.f32 %v558, %v561
        %vm563 = vweird.f32 %v557
        %vm564 = vweird.f32 %v558
        %vm565 = vmor %vm563, %vm564
        %v566 = vsel %vm565, %v558, %v562
        %v567 = vand.u32 2147483647, %v557
        %vm568 = vcmp.eq.f32.partialorder %v567, 8.507059e+37
        %v569 = vand.u32 %v557, 2147483648
        %v570 = vor.u32 1.1754944e-38, %v569
        %v571 = vsel %vm568, %v570, %v566
        %v572 = vmul.f32 1.0, %v571
        %v573 = vstv %s553
        %v574 = vmul.f32 %v573, %v572
        %v575 = vadd.f32 %v546, %v574
        %s576 = sld [smem:[#allocation3 + $0xa]]
        %v577 = vstv %s576
        %v578 = vmul.f32 %v282, %v577
        %s579 = sld [smem:[#allocation7 + $0xa]]
        %v580 = vstv %s579
        %v581 = vadd.f32 %v578, %v580
        %s582 = sld [smem:[#allocation9 + $0xa]]
        %v583 = vxor.u32 %v581, 2147483648
        %v584 = vmul.f32 %v583, 1.442695
        %v585 = vpow.pop %v584
        %v586 = vadd.f32 %v585, 1.0
        %v587 = vrcp.pop %v586
        %v588 = vmul.f32 %v586, %v587
        %v589 = vsub.f32 1.0, %v588
        %v590 = vmul.f32 %v587, %v589
        %v591 = vadd.f32 %v587, %v590
        %vm592 = vweird.f32 %v586
        %vm593 = vweird.f32 %v587
        %vm594 = vmor %vm592, %vm593
        %v595 = vsel %vm594, %v587, %v591
        %v596 = vand.u32 2147483647, %v586
        %vm597 = vcmp.eq.f32.partialorder %v596, 8.507059e+37
        %v598 = vand.u32 %v586, 2147483648
        %v599 = vor.u32 1.1754944e-38, %v598
        %v600 = vsel %vm597, %v599, %v595
        %v601 = vmul.f32 1.0, %v600
        %v602 = vstv %s582
        %v603 = vmul.f32 %v602, %v601
        %v604 = vadd.f32 %v575, %v603
        %s605 = sld [smem:[#allocation3 + $0xb]]
        %v606 = vstv %s605
        %v607 = vmul.f32 %v282, %v606
        %s608 = sld [smem:[#allocation7 + $0xb]]
        %v609 = vstv %s608
        %v610 = vadd.f32 %v607, %v609
        %s611 = sld [smem:[#allocation9 + $0xb]]
        %v612 = vxor.u32 %v610, 2147483648
        %v613 = vmul.f32 %v612, 1.442695
        %v614 = vpow.pop %v613
        %v615 = vadd.f32 %v614, 1.0
        %v616 = vrcp.pop %v615
        %v617 = vmul.f32 %v615, %v616
        %v618 = vsub.f32 1.0, %v617
        %v619 = vmul.f32 %v616, %v618
        %v620 = vadd.f32 %v616, %v619
        %vm621 = vweird.f32 %v615
        %vm622 = vweird.f32 %v616
        %vm623 = vmor %vm621, %vm622
        %v624 = vsel %vm623, %v616, %v620
        %v625 = vand.u32 2147483647, %v615
        %vm626 = vcmp.eq.f32.partialorder %v625, 8.507059e+37
        %v627 = vand.u32 %v615, 2147483648
        %v628 = vor.u32 1.1754944e-38, %v627
        %v629 = vsel %vm626, %v628, %v624
        %v630 = vmul.f32 1.0, %v629
        %v631 = vstv %s611
        %v632 = vmul.f32 %v631, %v630
        %v633 = vadd.f32 %v604, %v632
        %s634 = sld [smem:[#allocation3 + $0xc]]
        %v635 = vstv %s634
        %v636 = vmul.f32 %v282, %v635
        %s637 = sld [smem:[#allocation7 + $0xc]]
        %v638 = vstv %s637
        %v639 = vadd.f32 %v636, %v638
        %s640 = sld [smem:[#allocation9 + $0xc]]
        %v641 = vxor.u32 %v639, 2147483648
        %v642 = vmul.f32 %v641, 1.442695
        %v643 = vpow.pop %v642
        %v644 = vadd.f32 %v643, 1.0
        %v645 = vrcp.pop %v644
        %v646 = vmul.f32 %v644, %v645
        %v647 = vsub.f32 1.0, %v646
        %v648 = vmul.f32 %v645, %v647
        %v649 = vadd.f32 %v645, %v648
        %vm650 = vweird.f32 %v644
        %vm651 = vweird.f32 %v645
        %vm652 = vmor %vm650, %vm651
        %v653 = vsel %vm652, %v645, %v649
        %v654 = vand.u32 2147483647, %v644
        %vm655 = vcmp.eq.f32.partialorder %v654, 8.507059e+37
        %v656 = vand.u32 %v644, 2147483648
        %v657 = vor.u32 1.1754944e-38, %v656
        %v658 = vsel %vm655, %v657, %v653
        %v659 = vmul.f32 1.0, %v658
        %v660 = vstv %s640
        %v661 = vmul.f32 %v660, %v659
        %v662 = vadd.f32 %v633, %v661
        %s663 = sld [smem:[#allocation3 + $0xd]]
        %v664 = vstv %s663
        %v665 = vmul.f32 %v282, %v664
        %s666 = sld [smem:[#allocation7 + $0xd]]
        %v667 = vstv %s666
        %v668 = vadd.f32 %v665, %v667
        %s669 = sld [smem:[#allocation9 + $0xd]]
        %v670 = vxor.u32 %v668, 2147483648
        %v671 = vmul.f32 %v670, 1.442695
        %v672 = vpow.pop %v671
        %v673 = vadd.f32 %v672, 1.0
        %v674 = vrcp.pop %v673
        %v675 = vmul.f32 %v673, %v674
        %v676 = vsub.f32 1.0, %v675
        %v677 = vmul.f32 %v674, %v676
        %v678 = vadd.f32 %v674, %v677
        %vm679 = vweird.f32 %v673
        %vm680 = vweird.f32 %v674
        %vm681 = vmor %vm679, %vm680
        %v682 = vsel %vm681, %v674, %v678
        %v683 = vand.u32 2147483647, %v673
        %vm684 = vcmp.eq.f32.partialorder %v683, 8.507059e+37
        %v685 = vand.u32 %v673, 2147483648
        %v686 = vor.u32 1.1754944e-38, %v685
        %v687 = vsel %vm684, %v686, %v682
        %v688 = vmul.f32 1.0, %v687
        %v689 = vstv %s669
        %v690 = vmul.f32 %v689, %v688
        %v691 = vadd.f32 %v662, %v690
        %s692 = sld [smem:[#allocation3 + $0xe]]
        %v693 = vstv %s692
        %v694 = vmul.f32 %v282, %v693
        %s695 = sld [smem:[#allocation7 + $0xe]]
        %v696 = vstv %s695
        %v697 = vadd.f32 %v694, %v696
        %s698 = sld [smem:[#allocation9 + $0xe]]
        %v699 = vxor.u32 %v697, 2147483648
        %v700 = vmul.f32 %v699, 1.442695
        %v701 = vpow.pop %v700
        %v702 = vadd.f32 %v701, 1.0
        %v703 = vrcp.pop %v702
        %v704 = vmul.f32 %v702, %v703
        %v705 = vsub.f32 1.0, %v704
        %v706 = vmul.f32 %v703, %v705
        %v707 = vadd.f32 %v703, %v706
        %vm708 = vweird.f32 %v702
        %vm709 = vweird.f32 %v703
        %vm710 = vmor %vm708, %vm709
        %v711 = vsel %vm710, %v703, %v707
        %v712 = vand.u32 2147483647, %v702
        %vm713 = vcmp.eq.f32.partialorder %v712, 8.507059e+37
        %v714 = vand.u32 %v702, 2147483648
        %v715 = vor.u32 1.1754944e-38, %v714
        %v716 = vsel %vm713, %v715, %v711
        %v717 = vmul.f32 1.0, %v716
        %v718 = vstv %s698
        %v719 = vmul.f32 %v718, %v717
        %v720 = vadd.f32 %v691, %v719
        %s721 = sld [smem:[#allocation3 + $0xf]]
        %v722 = vstv %s721
        %v723 = vmul.f32 %v282, %v722
        %s724 = sld [smem:[#allocation7 + $0xf]]
        %v725 = vstv %s724
        %v726 = vadd.f32 %v723, %v725
        %s727 = sld [smem:[#allocation9 + $0xf]]
        %v728 = vxor.u32 %v726, 2147483648
        %v729 = vmul.f32 %v728, 1.442695
        %v730 = vpow.pop %v729
        %v731 = vadd.f32 %v730, 1.0
        %v732 = vrcp.pop %v731
        %v733 = vmul.f32 %v731, %v732
        %v734 = vsub.f32 1.0, %v733
        %v735 = vmul.f32 %v732, %v734
        %v736 = vadd.f32 %v732, %v735
        %vm737 = vweird.f32 %v731
        %vm738 = vweird.f32 %v732
        %vm739 = vmor %vm737, %vm738
        %v740 = vsel %vm739, %v732, %v736
        %v741 = vand.u32 2147483647, %v731
        %vm742 = vcmp.eq.f32.partialorder %v741, 8.507059e+37
        %v743 = vand.u32 %v731, 2147483648
        %v744 = vor.u32 1.1754944e-38, %v743
        %v745 = vsel %vm742, %v744, %v740
        %v746 = vmul.f32 1.0, %v745
        %v747 = vstv %s727
        %v748 = vmul.f32 %v747, %v746
        %v749 = vadd.f32 %v720, %v748
        %s750 = sld [smem:[#allocation3 + $0x10]]
        %v751 = vstv %s750
        %v752 = vmul.f32 %v282, %v751
        %s753 = sld [smem:[#allocation7 + $0x10]]
        %v754 = vstv %s753
        %v755 = vadd.f32 %v752, %v754
        %s756 = sld [smem:[#allocation9 + $0x10]]
        %v757 = vxor.u32 %v755, 2147483648
        %v758 = vmul.f32 %v757, 1.442695
        %v759 = vpow.pop %v758
        %v760 = vadd.f32 %v759, 1.0
        %v761 = vrcp.pop %v760
        %v762 = vmul.f32 %v760, %v761
        %v763 = vsub.f32 1.0, %v762
        %v764 = vmul.f32 %v761, %v763
        %v765 = vadd.f32 %v761, %v764
        %vm766 = vweird.f32 %v760
        %vm767 = vweird.f32 %v761
        %vm768 = vmor %vm766, %vm767
        %v769 = vsel %vm768, %v761, %v765
        %v770 = vand.u32 2147483647, %v760
        %vm771 = vcmp.eq.f32.partialorder %v770, 8.507059e+37
        %v772 = vand.u32 %v760, 2147483648
        %v773 = vor.u32 1.1754944e-38, %v772
        %v774 = vsel %vm771, %v773, %v769
        %v775 = vmul.f32 1.0, %v774
        %v776 = vstv %s756
        %v777 = vmul.f32 %v776, %v775
        %v778 = vadd.f32 %v749, %v777
        %s779 = sld [smem:[#allocation3 + $0x11]]
        %v780 = vstv %s779
        %v781 = vmul.f32 %v282, %v780
        %s782 = sld [smem:[#allocation7 + $0x11]]
        %v783 = vstv %s782
        %v784 = vadd.f32 %v781, %v783
        %s785 = sld [smem:[#allocation9 + $0x11]]
        %v786 = vxor.u32 %v784, 2147483648
        %v787 = vmul.f32 %v786, 1.442695
        %v788 = vpow.pop %v787
        %v789 = vadd.f32 %v788, 1.0
        %v790 = vrcp.pop %v789
        %v791 = vmul.f32 %v789, %v790
        %v792 = vsub.f32 1.0, %v791
        %v793 = vmul.f32 %v790, %v792
        %v794 = vadd.f32 %v790, %v793
        %vm795 = vweird.f32 %v789
        %vm796 = vweird.f32 %v790
        %vm797 = vmor %vm795, %vm796
        %v798 = vsel %vm797, %v790, %v794
        %v799 = vand.u32 2147483647, %v789
        %vm800 = vcmp.eq.f32.partialorder %v799, 8.507059e+37
        %v801 = vand.u32 %v789, 2147483648
        %v802 = vor.u32 1.1754944e-38, %v801
        %v803 = vsel %vm800, %v802, %v798
        %v804 = vmul.f32 1.0, %v803
        %v805 = vstv %s785
        %v806 = vmul.f32 %v805, %v804
        %v807 = vadd.f32 %v778, %v806
        %s808 = sld [smem:[#allocation3 + $0x12]]
        %v809 = vstv %s808
        %v810 = vmul.f32 %v282, %v809
        %s811 = sld [smem:[#allocation7 + $0x12]]
        %v812 = vstv %s811
        %v813 = vadd.f32 %v810, %v812
        %s814 = sld [smem:[#allocation9 + $0x12]]
        %v815 = vxor.u32 %v813, 2147483648
        %v816 = vmul.f32 %v815, 1.442695
        %v817 = vpow.pop %v816
        %v818 = vadd.f32 %v817, 1.0
        %v819 = vrcp.pop %v818
        %v820 = vmul.f32 %v818, %v819
        %v821 = vsub.f32 1.0, %v820
        %v822 = vmul.f32 %v819, %v821
        %v823 = vadd.f32 %v819, %v822
        %vm824 = vweird.f32 %v818
        %vm825 = vweird.f32 %v819
        %vm826 = vmor %vm824, %vm825
        %v827 = vsel %vm826, %v819, %v823
        %v828 = vand.u32 2147483647, %v818
        %vm829 = vcmp.eq.f32.partialorder %v828, 8.507059e+37
        %v830 = vand.u32 %v818, 2147483648
        %v831 = vor.u32 1.1754944e-38, %v830
        %v832 = vsel %vm829, %v831, %v827
        %v833 = vmul.f32 1.0, %v832
        %v834 = vstv %s814
        %v835 = vmul.f32 %v834, %v833
        %v836 = vadd.f32 %v807, %v835
        %s837 = sld [smem:[#allocation3 + $0x13]]
        %v838 = vstv %s837
        %v839 = vmul.f32 %v282, %v838
        %s840 = sld [smem:[#allocation7 + $0x13]]
        %v841 = vstv %s840
        %v842 = vadd.f32 %v839, %v841
        %s843 = sld [smem:[#allocation9 + $0x13]]
        %v844 = vxor.u32 %v842, 2147483648
        %v845 = vmul.f32 %v844, 1.442695
        %v846 = vpow.pop %v845
        %v847 = vadd.f32 %v846, 1.0
        %v848 = vrcp.pop %v847
        %v849 = vmul.f32 %v847, %v848
        %v850 = vsub.f32 1.0, %v849
        %v851 = vmul.f32 %v848, %v850
        %v852 = vadd.f32 %v848, %v851
        %vm853 = vweird.f32 %v847
        %vm854 = vweird.f32 %v848
        %vm855 = vmor %vm853, %vm854
        %v856 = vsel %vm855, %v848, %v852
        %v857 = vand.u32 2147483647, %v847
        %vm858 = vcmp.eq.f32.partialorder %v857, 8.507059e+37
        %v859 = vand.u32 %v847, 2147483648
        %v860 = vor.u32 1.1754944e-38, %v859
        %v861 = vsel %vm858, %v860, %v856
        %v862 = vmul.f32 1.0, %v861
        %v863 = vstv %s843
        %v864 = vmul.f32 %v863, %v862
        %v865 = vadd.f32 %v836, %v864
        %s866 = sld [smem:[#allocation3 + $0x14]]
        %v867 = vstv %s866
        %v868 = vmul.f32 %v282, %v867
        %s869 = sld [smem:[#allocation7 + $0x14]]
        %v870 = vstv %s869
        %v871 = vadd.f32 %v868, %v870
        %s872 = sld [smem:[#allocation9 + $0x14]]
        %v873 = vxor.u32 %v871, 2147483648
        %v874 = vmul.f32 %v873, 1.442695
        %v875 = vpow.pop %v874
        %v876 = vadd.f32 %v875, 1.0
        %v877 = vrcp.pop %v876
        %v878 = vmul.f32 %v876, %v877
        %v879 = vsub.f32 1.0, %v878
        %v880 = vmul.f32 %v877, %v879
        %v881 = vadd.f32 %v877, %v880
        %vm882 = vweird.f32 %v876
        %vm883 = vweird.f32 %v877
        %vm884 = vmor %vm882, %vm883
        %v885 = vsel %vm884, %v877, %v881
        %v886 = vand.u32 2147483647, %v876
        %vm887 = vcmp.eq.f32.partialorder %v886, 8.507059e+37
        %v888 = vand.u32 %v876, 2147483648
        %v889 = vor.u32 1.1754944e-38, %v888
        %v890 = vsel %vm887, %v889, %v885
        %v891 = vmul.f32 1.0, %v890
        %v892 = vstv %s872
        %v893 = vmul.f32 %v892, %v891
        %v894 = vadd.f32 %v865, %v893
        %s895 = sld [smem:[#allocation3 + $0x15]]
        %v896 = vstv %s895
        %v897 = vmul.f32 %v282, %v896
        %s898 = sld [smem:[#allocation7 + $0x15]]
        %v899 = vstv %s898
        %v900 = vadd.f32 %v897, %v899
        %s901 = sld [smem:[#allocation9 + $0x15]]
        %v902 = vxor.u32 %v900, 2147483648
        %v903 = vmul.f32 %v902, 1.442695
        %v904 = vpow.pop %v903
        %v905 = vadd.f32 %v904, 1.0
        %v906 = vrcp.pop %v905
        %v907 = vmul.f32 %v905, %v906
        %v908 = vsub.f32 1.0, %v907
        %v909 = vmul.f32 %v906, %v908
        %v910 = vadd.f32 %v906, %v909
        %vm911 = vweird.f32 %v905
        %vm912 = vweird.f32 %v906
        %vm913 = vmor %vm911, %vm912
        %v914 = vsel %vm913, %v906, %v910
        %v915 = vand.u32 2147483647, %v905
        %vm916 = vcmp.eq.f32.partialorder %v915, 8.507059e+37
        %v917 = vand.u32 %v905, 2147483648
        %v918 = vor.u32 1.1754944e-38, %v917
        %v919 = vsel %vm916, %v918, %v914
        %v920 = vmul.f32 1.0, %v919
        %v921 = vstv %s901
        %v922 = vmul.f32 %v921, %v920
        %v923 = vadd.f32 %v894, %v922
        %s924 = sld [smem:[#allocation3 + $0x16]]
        %v925 = vstv %s924
        %v926 = vmul.f32 %v282, %v925
        %s927 = sld [smem:[#allocation7 + $0x16]]
        %v928 = vstv %s927
        %v929 = vadd.f32 %v926, %v928
        %s930 = sld [smem:[#allocation9 + $0x16]]
        %v931 = vxor.u32 %v929, 2147483648
        %v932 = vmul.f32 %v931, 1.442695
        %v933 = vpow.pop %v932
        %v934 = vadd.f32 %v933, 1.0
        %v935 = vrcp.pop %v934
        %v936 = vmul.f32 %v934, %v935
        %v937 = vsub.f32 1.0, %v936
        %v938 = vmul.f32 %v935, %v937
        %v939 = vadd.f32 %v935, %v938
        %vm940 = vweird.f32 %v934
        %vm941 = vweird.f32 %v935
        %vm942 = vmor %vm940, %vm941
        %v943 = vsel %vm942, %v935, %v939
        %v944 = vand.u32 2147483647, %v934
        %vm945 = vcmp.eq.f32.partialorder %v944, 8.507059e+37
        %v946 = vand.u32 %v934, 2147483648
        %v947 = vor.u32 1.1754944e-38, %v946
        %v948 = vsel %vm945, %v947, %v943
        %v949 = vmul.f32 1.0, %v948
        %v950 = vstv %s930
        %v951 = vmul.f32 %v950, %v949
        %v952 = vadd.f32 %v923, %v951
        %s953 = sld [smem:[#allocation3 + $0x17]]
        %v954 = vstv %s953
        %v955 = vmul.f32 %v282, %v954
        %s956 = sld [smem:[#allocation7 + $0x17]]
        %v957 = vstv %s956
        %v958 = vadd.f32 %v955, %v957
        %s959 = sld [smem:[#allocation9 + $0x17]]
        %v960 = vxor.u32 %v958, 2147483648
        %v961 = vmul.f32 %v960, 1.442695
        %v962 = vpow.pop %v961
        %v963 = vadd.f32 %v962, 1.0
        %v964 = vrcp.pop %v963
        %v965 = vmul.f32 %v963, %v964
        %v966 = vsub.f32 1.0, %v965
        %v967 = vmul.f32 %v964, %v966
        %v968 = vadd.f32 %v964, %v967
        %vm969 = vweird.f32 %v963
        %vm970 = vweird.f32 %v964
        %vm971 = vmor %vm969, %vm970
        %v972 = vsel %vm971, %v964, %v968
        %v973 = vand.u32 2147483647, %v963
        %vm974 = vcmp.eq.f32.partialorder %v973, 8.507059e+37
        %v975 = vand.u32 %v963, 2147483648
        %v976 = vor.u32 1.1754944e-38, %v975
        %v977 = vsel %vm974, %v976, %v972
        %v978 = vmul.f32 1.0, %v977
        %v979 = vstv %s959
        %v980 = vmul.f32 %v979, %v978
        %v981 = vadd.f32 %v952, %v980
        %s982 = sld [smem:[#allocation3 + $0x18]]
        %v983 = vstv %s982
        %v984 = vmul.f32 %v282, %v983
        %s985 = sld [smem:[#allocation7 + $0x18]]
        %v986 = vstv %s985
        %v987 = vadd.f32 %v984, %v986
        %s988 = sld [smem:[#allocation9 + $0x18]]
        %v989 = vxor.u32 %v987, 2147483648
        %v990 = vmul.f32 %v989, 1.442695
        %v991 = vpow.pop %v990
        %v992 = vadd.f32 %v991, 1.0
        %v993 = vrcp.pop %v992
        %v994 = vmul.f32 %v992, %v993
        %v995 = vsub.f32 1.0, %v994
        %v996 = vmul.f32 %v993, %v995
        %v997 = vadd.f32 %v993, %v996
        %vm998 = vweird.f32 %v992
        %vm999 = vweird.f32 %v993
        %vm1000 = vmor %vm998, %vm999
        %v1001 = vsel %vm1000, %v993, %v997
        %v1002 = vand.u32 2147483647, %v992
        %vm1003 = vcmp.eq.f32.partialorder %v1002, 8.507059e+37
        %v1004 = vand.u32 %v992, 2147483648
        %v1005 = vor.u32 1.1754944e-38, %v1004
        %v1006 = vsel %vm1003, %v1005, %v1001
        %v1007 = vmul.f32 1.0, %v1006
        %v1008 = vstv %s988
        %v1009 = vmul.f32 %v1008, %v1007
        %v1010 = vadd.f32 %v981, %v1009
        %s1011 = sld [smem:[#allocation3 + $0x19]]
        %v1012 = vstv %s1011
        %v1013 = vmul.f32 %v282, %v1012
        %s1014 = sld [smem:[#allocation7 + $0x19]]
        %v1015 = vstv %s1014
        %v1016 = vadd.f32 %v1013, %v1015
        %s1017 = sld [smem:[#allocation9 + $0x19]]
        %v1018 = vxor.u32 %v1016, 2147483648
        %v1019 = vmul.f32 %v1018, 1.442695
        %v1020 = vpow.pop %v1019
        %v1021 = vadd.f32 %v1020, 1.0
        %v1022 = vrcp.pop %v1021
        %v1023 = vmul.f32 %v1021, %v1022
        %v1024 = vsub.f32 1.0, %v1023
        %v1025 = vmul.f32 %v1022, %v1024
        %v1026 = vadd.f32 %v1022, %v1025
        %vm1027 = vweird.f32 %v1021
        %vm1028 = vweird.f32 %v1022
        %vm1029 = vmor %vm1027, %vm1028
        %v1030 = vsel %vm1029, %v1022, %v1026
        %v1031 = vand.u32 2147483647, %v1021
        %vm1032 = vcmp.eq.f32.partialorder %v1031, 8.507059e+37
        %v1033 = vand.u32 %v1021, 2147483648
        %v1034 = vor.u32 1.1754944e-38, %v1033
        %v1035 = vsel %vm1032, %v1034, %v1030
        %v1036 = vmul.f32 1.0, %v1035
        %v1037 = vstv %s1017
        %v1038 = vmul.f32 %v1037, %v1036
        %v1039 = vadd.f32 %v1010, %v1038
        %s1040 = sld [smem:[#allocation3 + $0x1a]]
        %v1041 = vstv %s1040
        %v1042 = vmul.f32 %v282, %v1041
        %s1043 = sld [smem:[#allocation7 + $0x1a]]
        %v1044 = vstv %s1043
        %v1045 = vadd.f32 %v1042, %v1044
        %s1046 = sld [smem:[#allocation9 + $0x1a]]
        %v1047 = vxor.u32 %v1045, 2147483648
        %v1048 = vmul.f32 %v1047, 1.442695
        %v1049 = vpow.pop %v1048
        %v1050 = vadd.f32 %v1049, 1.0
        %v1051 = vrcp.pop %v1050
        %v1052 = vmul.f32 %v1050, %v1051
        %v1053 = vsub.f32 1.0, %v1052
        %v1054 = vmul.f32 %v1051, %v1053
        %v1055 = vadd.f32 %v1051, %v1054
        %vm1056 = vweird.f32 %v1050
        %vm1057 = vweird.f32 %v1051
        %vm1058 = vmor %vm1056, %vm1057
        %v1059 = vsel %vm1058, %v1051, %v1055
        %v1060 = vand.u32 2147483647, %v1050
        %vm1061 = vcmp.eq.f32.partialorder %v1060, 8.507059e+37
        %v1062 = vand.u32 %v1050, 2147483648
        %v1063 = vor.u32 1.1754944e-38, %v1062
        %v1064 = vsel %vm1061, %v1063, %v1059
        %v1065 = vmul.f32 1.0, %v1064
        %v1066 = vstv %s1046
        %v1067 = vmul.f32 %v1066, %v1065
        %v1068 = vadd.f32 %v1039, %v1067
        %s1069 = sld [smem:[#allocation3 + $0x1b]]
        %v1070 = vstv %s1069
        %v1071 = vmul.f32 %v282, %v1070
        %s1072 = sld [smem:[#allocation7 + $0x1b]]
        %v1073 = vstv %s1072
        %v1074 = vadd.f32 %v1071, %v1073
        %s1075 = sld [smem:[#allocation9 + $0x1b]]
        %v1076 = vxor.u32 %v1074, 2147483648
        %v1077 = vmul.f32 %v1076, 1.442695
        %v1078 = vpow.pop %v1077
        %v1079 = vadd.f32 %v1078, 1.0
        %v1080 = vrcp.pop %v1079
        %v1081 = vmul.f32 %v1079, %v1080
        %v1082 = vsub.f32 1.0, %v1081
        %v1083 = vmul.f32 %v1080, %v1082
        %v1084 = vadd.f32 %v1080, %v1083
        %vm1085 = vweird.f32 %v1079
        %vm1086 = vweird.f32 %v1080
        %vm1087 = vmor %vm1085, %vm1086
        %v1088 = vsel %vm1087, %v1080, %v1084
        %v1089 = vand.u32 2147483647, %v1079
        %vm1090 = vcmp.eq.f32.partialorder %v1089, 8.507059e+37
        %v1091 = vand.u32 %v1079, 2147483648
        %v1092 = vor.u32 1.1754944e-38, %v1091
        %v1093 = vsel %vm1090, %v1092, %v1088
        %v1094 = vmul.f32 1.0, %v1093
        %v1095 = vstv %s1075
        %v1096 = vmul.f32 %v1095, %v1094
        %v1097 = vadd.f32 %v1068, %v1096
        %s1098 = sld [smem:[#allocation3 + $0x1c]]
        %v1099 = vstv %s1098
        %v1100 = vmul.f32 %v282, %v1099
        %s1101 = sld [smem:[#allocation7 + $0x1c]]
        %v1102 = vstv %s1101
        %v1103 = vadd.f32 %v1100, %v1102
        %s1104 = sld [smem:[#allocation9 + $0x1c]]
        %v1105 = vxor.u32 %v1103, 2147483648
        %v1106 = vmul.f32 %v1105, 1.442695
        %v1107 = vpow.pop %v1106
        %v1108 = vadd.f32 %v1107, 1.0
        %v1109 = vrcp.pop %v1108
        %v1110 = vmul.f32 %v1108, %v1109
        %v1111 = vsub.f32 1.0, %v1110
        %v1112 = vmul.f32 %v1109, %v1111
        %v1113 = vadd.f32 %v1109, %v1112
        %vm1114 = vweird.f32 %v1108
        %vm1115 = vweird.f32 %v1109
        %vm1116 = vmor %vm1114, %vm1115
        %v1117 = vsel %vm1116, %v1109, %v1113
        %v1118 = vand.u32 2147483647, %v1108
        %vm1119 = vcmp.eq.f32.partialorder %v1118, 8.507059e+37
        %v1120 = vand.u32 %v1108, 2147483648
        %v1121 = vor.u32 1.1754944e-38, %v1120
        %v1122 = vsel %vm1119, %v1121, %v1117
        %v1123 = vmul.f32 1.0, %v1122
        %v1124 = vstv %s1104
        %v1125 = vmul.f32 %v1124, %v1123
        %v1126 = vadd.f32 %v1097, %v1125
        %s1127 = sld [smem:[#allocation3 + $0x1d]]
        %v1128 = vstv %s1127
        %v1129 = vmul.f32 %v282, %v1128
        %s1130 = sld [smem:[#allocation7 + $0x1d]]
        %v1131 = vstv %s1130
        %v1132 = vadd.f32 %v1129, %v1131
        %s1133 = sld [smem:[#allocation9 + $0x1d]]
        %v1134 = vxor.u32 %v1132, 2147483648
        %v1135 = vmul.f32 %v1134, 1.442695
        %v1136 = vpow.pop %v1135
        %v1137 = vadd.f32 %v1136, 1.0
        %v1138 = vrcp.pop %v1137
        %v1139 = vmul.f32 %v1137, %v1138
        %v1140 = vsub.f32 1.0, %v1139
        %v1141 = vmul.f32 %v1138, %v1140
        %v1142 = vadd.f32 %v1138, %v1141
        %vm1143 = vweird.f32 %v1137
        %vm1144 = vweird.f32 %v1138
        %vm1145 = vmor %vm1143, %vm1144
        %v1146 = vsel %vm1145, %v1138, %v1142
        %v1147 = vand.u32 2147483647, %v1137
        %vm1148 = vcmp.eq.f32.partialorder %v1147, 8.507059e+37
        %v1149 = vand.u32 %v1137, 2147483648
        %v1150 = vor.u32 1.1754944e-38, %v1149
        %v1151 = vsel %vm1148, %v1150, %v1146
        %v1152 = vmul.f32 1.0, %v1151
        %v1153 = vstv %s1133
        %v1154 = vmul.f32 %v1153, %v1152
        %v1155 = vadd.f32 %v1126, %v1154
        %s1156 = sld [smem:[#allocation3 + $0x1e]]
        %v1157 = vstv %s1156
        %v1158 = vmul.f32 %v282, %v1157
        %s1159 = sld [smem:[#allocation7 + $0x1e]]
        %v1160 = vstv %s1159
        %v1161 = vadd.f32 %v1158, %v1160
        %s1162 = sld [smem:[#allocation9 + $0x1e]]
        %v1163 = vxor.u32 %v1161, 2147483648
        %v1164 = vmul.f32 %v1163, 1.442695
        %v1165 = vpow.pop %v1164
        %v1166 = vadd.f32 %v1165, 1.0
        %v1167 = vrcp.pop %v1166
        %v1168 = vmul.f32 %v1166, %v1167
        %v1169 = vsub.f32 1.0, %v1168
        %v1170 = vmul.f32 %v1167, %v1169
        %v1171 = vadd.f32 %v1167, %v1170
        %vm1172 = vweird.f32 %v1166
        %vm1173 = vweird.f32 %v1167
        %vm1174 = vmor %vm1172, %vm1173
        %v1175 = vsel %vm1174, %v1167, %v1171
        %v1176 = vand.u32 2147483647, %v1166
        %vm1177 = vcmp.eq.f32.partialorder %v1176, 8.507059e+37
        %v1178 = vand.u32 %v1166, 2147483648
        %v1179 = vor.u32 1.1754944e-38, %v1178
        %v1180 = vsel %vm1177, %v1179, %v1175
        %v1181 = vmul.f32 1.0, %v1180
        %v1182 = vstv %s1162
        %v1183 = vmul.f32 %v1182, %v1181
        %v1184 = vadd.f32 %v1155, %v1183
        %s1185 = sld [smem:[#allocation3 + $0x1f]]
        %v1186 = vstv %s1185
        %v1187 = vmul.f32 %v282, %v1186
        %s1188 = sld [smem:[#allocation7 + $0x1f]]
        %v1189 = vstv %s1188
        %v1190 = vadd.f32 %v1187, %v1189
        %s1191 = sld [smem:[#allocation9 + $0x1f]]
        %v1192 = vxor.u32 %v1190, 2147483648
        %v1193 = vmul.f32 %v1192, 1.442695
        %v1194 = vpow.pop %v1193
        %v1195 = vadd.f32 %v1194, 1.0
        %v1196 = vrcp.pop %v1195
        %v1197 = vmul.f32 %v1195, %v1196
        %v1198 = vsub.f32 1.0, %v1197
        %v1199 = vmul.f32 %v1196, %v1198
        %v1200 = vadd.f32 %v1196, %v1199
        %vm1201 = vweird.f32 %v1195
        %vm1202 = vweird.f32 %v1196
        %vm1203 = vmor %vm1201, %vm1202
        %v1204 = vsel %vm1203, %v1196, %v1200
        %v1205 = vand.u32 2147483647, %v1195
        %vm1206 = vcmp.eq.f32.partialorder %v1205, 8.507059e+37
        %v1207 = vand.u32 %v1195, 2147483648
        %v1208 = vor.u32 1.1754944e-38, %v1207
        %v1209 = vsel %vm1206, %v1208, %v1204
        %v1210 = vmul.f32 1.0, %v1209
        %v1211 = vstv %s1191
        %v1212 = vmul.f32 %v1211, %v1210
        %v1213 = vadd.f32 %v1184, %v1212
        %1214 = vst [vmem:[%s281] sm:$0xff] %v1213
        %s1215 = sand.u32 %s143, 1
        %s1216 = scalar_lea.sflag [#allocation5], %s1215
        %s1217 = sand.u32 %s143, 1
        %s1218 = smul.addr %s1217, 8
        %s1219 = scalar_lea.vmem [#allocation11], %s1218
        // Predicated region
        $region57: #{tpu_custom_call.1} parent=39 // pred_check
          %p1220 = pneg %p153
        $region58: #{tpu_custom_call.1} parent=39 // pred_check_branch
          %1222 = sbr.rel (%p1220) target = $region60
        $region59: #{tpu_custom_call.1} parent=39 // pred_region
          %1224 = vsyncadd %s1216, 0
          %s1225 = smul.addr %s25, 8
          %s1226 = scalar_lea.hbm %s5, %s1225
          %s1228 = sshll.u32 %s1219, 4
          %s1229 = int_to_ptr.vmem [resolvable:$true] %s1228
          %s1230 = sshll.u32 %s1226, 4
          %s1231 = int_to_ptr.hbm [resolvable:$true] %s1230
          %1233 = dma.vmem_to_hbm [thread:$0]  %s1229, 128, %s1231, %s1216
        $region60: #{tpu_custom_call.1} parent=39 // pred_fallthru
          _
      $region40: #{tpu_custom_call.1} parent=5 // pred_fallthru
        _
      %p1234 = scmp.le.s32.totalorder 2, %s20
      // Predicated region
      $region61: #{tpu_custom_call.1} parent=5 // pred_check
        %p1235 = pneg %p1234
      $region62: #{tpu_custom_call.1} parent=5 // pred_check_branch
        %1237 = sbr.rel (%p1235) target = $region64
      $region63: #{tpu_custom_call.1} parent=5 // pred_region
        %s1238 = ssub.s32 %s20, 2
        // Predicated region
        $region65: #{tpu_custom_call.1} parent=63 // pred_check
          %p1239 = pneg %p159
        $region66: #{tpu_custom_call.1} parent=63 // pred_check_branch
          %1241 = sbr.rel (%p1239) target = $region68
        $region67: #{tpu_custom_call.1} parent=63 // pred_region
          %s1242 = sand.u32 %s144, 1
          %s1243 = scalar_lea.sflag [#allocation5], %s1242
          %s1244 = sand.u32 %s144, 1
          %s1245 = smul.addr %s1244, 8
          %s1246 = scalar_lea.vmem [#allocation11], %s1245
          %1248 = dma.done %s1243, 128
        $region68: #{tpu_custom_call.1} parent=63 // pred_fallthru
          _
      $region64: #{tpu_custom_call.1} parent=5 // pred_fallthru
        _
    $region6: #{tpu_custom_call.1} parent=1 // loop_footer
      %s24 = sadd.s32 1, %s20
    $region7: #{tpu_custom_call.1} parent=1 // loop_footer_branch
      %19 = sbr.rel target = $region3
    $region8: #{tpu_custom_call.1} parent=1 // loop_exit
      _
    %1249 = vsyncpa [#allocation4], 1
    %s1250 = scalar_lea.sflag [#allocation4], 1
    %1251 = vsyncpa %s1250, 1
    %1252 = vsyncpa [#allocation5], 1
    %s1253 = scalar_lea.sflag [#allocation5], 1
    %1254 = vsyncpa %s1253, 1
    %1255 = vsyncpa [#allocation6], 1
    %s1256 = scalar_lea.sflag [#allocation6], 1
    %1257 = vsyncpa %s1256, 1
    %1258 = vsyncpa [#allocation8], 1

</llo_original>
